<compile_context>
chip_gen: v7x
topology: tpu7x:2x2x1
jax: 0.10.0
libtpu: 0.0.40
codegen_flags: <defaults>
</compile_context>

<pallas_src>
import functools
import math

import jax
import jax.numpy as jnp
from jax.experimental import pallas as pl
from jax.experimental.pallas import tpu as pltpu

LN_EPS = 1e-5


def _layer_norm(x, gamma, beta):
    # x: (..., D); biased variance, matches nn.LayerNorm.  Kept in f32.
    mean = jnp.mean(x, axis=-1, keepdims=True)
    var = jnp.mean(jnp.square(x - mean), axis=-1, keepdims=True)
    inv = jax.lax.rsqrt(var + LN_EPS)
    return (x - mean) * inv * gamma + beta


def _gelu_exact(x):
    # torch nn.GELU() default: exact erf formulation (f32 on the VPU/EUP).
    return 0.5 * x * (1.0 + jax.lax.erf(x * (1.0 / math.sqrt(2.0))))


def _encoder_kernel(x_ref,
                    w_qkv_ref, b_qkv_ref, wo_ref, bo_ref,
                    ln1_g_ref, ln1_b_ref,
                    w1_ref, b1_ref, w2_ref, b2_ref,
                    ln2_g_ref, ln2_b_ref,
                    o_ref, *, n_heads, d_k):
    S, D = x_ref.shape           # batch dim is squeezed by the BlockSpec
    H = n_heads

    x = x_ref[...]                                   # (S, D) f32
    x_bf = x.astype(jnp.bfloat16)

    # ---------------- Fused QKV projection (lane-dense, full MXU width) ----
    qkv = jnp.dot(x_bf, w_qkv_ref[...],
                  preferred_element_type=jnp.float32) + b_qkv_ref[...]   # (S, 3D)

    # Split heads with static lane slices + leading-axis stack; the Q part of
    # the fused weight/bias was pre-scaled by 1/sqrt(d_k) on the host.
    def split_heads(base):
        cols = [qkv[:, base + h * d_k: base + (h + 1) * d_k] for h in range(H)]
        return jnp.stack(cols, axis=0).astype(jnp.bfloat16)              # (H, S, d_k)

    q = split_heads(0)
    k = split_heads(D)
    v = split_heads(2 * D)

    # ---------------- Attention (heads on the leading batch axis) ----------
    # TODO(synk): for realistic S (>=1k) add a query-tile grid axis with
    # flash-style online softmax instead of materializing (H, S, S) scores.
    scores = jnp.einsum("hqd,hkd->hqk", q, k,
                        preferred_element_type=jnp.float32)              # (H, S, S) f32
    scores = scores - jnp.max(scores, axis=-1, keepdims=True)
    p = jnp.exp(scores)
    # divide -> EUP approx reciprocal (frees VALU slots on the critical path)
    p = p * pl.reciprocal(jnp.sum(p, axis=-1, keepdims=True), approx=True)

    ctx = jnp.einsum("hqk,hkd->hqd", p.astype(jnp.bfloat16), v,
                     preferred_element_type=jnp.float32)                 # (H, S, d_k)

    # Merge heads (lane concat only) and apply ONE (D, D) output projection.
    ctx_cat = jnp.concatenate([ctx[h] for h in range(H)],
                              axis=-1).astype(jnp.bfloat16)              # (S, D)
    attn = jnp.dot(ctx_cat, wo_ref[...],
                   preferred_element_type=jnp.float32) + bo_ref[...]     # (S, D) f32

    # ---------------- AddNorm 1 (f32) --------------------------------------
    h1 = _layer_norm(attn + x, ln1_g_ref[...], ln1_b_ref[...])           # (S, D)

    # ---------------- Position-wise FF (exact GELU) ------------------------
    # TODO(synk): for realistic F (>=4k) tile the hidden dim F and accumulate
    # the second matmul into a VMEM scratch instead of holding (S, F) whole.
    h1_bf = h1.astype(jnp.bfloat16)
    ff = jnp.dot(h1_bf, w1_ref[...],
                 preferred_element_type=jnp.float32) + b1_ref[...]       # (S, F)
    ff = _gelu_exact(ff)
    ff_out = jnp.dot(ff.astype(jnp.bfloat16), w2_ref[...],
                     preferred_element_type=jnp.float32) + b2_ref[...]   # (S, D)

    # ---------------- AddNorm 2 (f32) --------------------------------------
    o_ref[...] = _layer_norm(ff_out + h1, ln2_g_ref[...], ln2_b_ref[...])


def _prep_params(params, n_heads):
    """Host-side re-layout: fold attn scale into Q columns, bf16 matmul weights."""
    D = params["w_in"].shape[0]
    d_k = D // n_heads
    scale = 1.0 / math.sqrt(d_k)
    # Column scaling: Q columns get 1/sqrt(d_k), K and V columns stay 1.
    col_scale = jnp.concatenate(
        [jnp.full((D,), scale, jnp.float32), jnp.ones((2 * D,), jnp.float32)])
    return {
        "w_qkv": (params["w_in"] * col_scale[None, :]).astype(jnp.bfloat16),
        "b_qkv": (params["b_in"] * col_scale[None, :]).astype(jnp.float32),
        "wo": params["w_out"].astype(jnp.bfloat16),
        "bo": params["b_out"].astype(jnp.float32),
        "ln1_g": params["ln1_g"].astype(jnp.float32),
        "ln1_b": params["ln1_b"].astype(jnp.float32),
        "w1": params["w1"].astype(jnp.bfloat16),
        "b1": params["b1"].astype(jnp.float32),
        "w2": params["w2"].astype(jnp.bfloat16),
        "b2": params["b2"].astype(jnp.float32),
        "ln2_g": params["ln2_g"].astype(jnp.float32),
        "ln2_b": params["ln2_b"].astype(jnp.float32),
    }


def _vmem_limit_bytes():
    # ~75% of physical VMEM, capped at 100 MiB: ≈48 MiB on v7x (64 MiB/TC),
    # ≈96 MiB on v5e/v6e (128 MiB) — leaves headroom for compiler scratch.
    try:
        cap = int(pltpu.get_tpu_info().vmem_capacity_bytes)
    except Exception:
        cap = 64 * 1024 * 1024
    return min(100 * 1024 * 1024, (cap * 3) // 4)


def transformer_encoder(x, params, *, n_heads):
    B, S, D = x.shape
    F = params["w1"].shape[1]
    assert D % n_heads == 0
    d_k = D // n_heads

    # One batch element per grid step: "parallel" batch axis for megacore
    # sharding (v7x) and >= B pipeline steps to hide x/o HBM transfers.
    grid = (B,)

    p = _prep_params(params, n_heads)
    order = ["w_qkv", "b_qkv", "wo", "bo", "ln1_g", "ln1_b",
             "w1", "b1", "w2", "b2", "ln2_g", "ln2_b"]

    # TODO(synk): mark these constant specs pipeline_mode=pl.Buffered(1) (no
    # double-buffering of grid-invariant weights) once confirmed supported,
    # to halve the weight VMEM footprint on v7x.
    def const_spec(shape):
        nd = len(shape)
        return pl.BlockSpec(shape, lambda b, _nd=nd: (0,) * _nd)

    in_specs = [pl.BlockSpec((None, S, D), lambda b: (b, 0, 0))]
    in_specs += [const_spec(p[name].shape) for name in order]

    # Advisory cost estimate for the XLA scheduler.
    flops = 2 * B * S * D * (4 * D + 2 * S + 2 * F)
    transcendentals = B * S * (n_heads * S + F + 4)
    bytes_accessed = (2 * B * S * D * 4
                      + sum(int(p[n].size) * p[n].dtype.itemsize for n in order))

    kernel = functools.partial(_encoder_kernel, n_heads=n_heads, d_k=d_k)

    return pl.pallas_call(
        kernel,
        out_shape=jax.ShapeDtypeStruct((B, S, D), jnp.float32),
        grid_spec=pltpu.PrefetchScalarGridSpec(
            num_scalar_prefetch=0,
            grid=grid,
            in_specs=in_specs,
            out_specs=pl.BlockSpec((None, S, D), lambda b: (b, 0, 0)),
        ),
        compiler_params=pltpu.CompilerParams(
            dimension_semantics=("parallel",),
            vmem_limit_bytes=_vmem_limit_bytes(),
        ),
        cost_estimate=pl.CostEstimate(
            flops=int(flops),
            transcendentals=int(transcendentals),
            bytes_accessed=int(bytes_accessed),
        ),
    )(x, *[p[name] for name in order])


def make_params(key, input_dim, n_heads, ff_hidden_dim):
    D, F = input_dim, ff_hidden_dim
    ks = jax.random.split(key, 8)
    s = 0.05
    # Linear weights stored already transposed: (in_features, out_features)
    return {
        "w_in":  (jax.random.normal(ks[0], (D, 3 * D)) * s).astype(jnp.float32),
        "b_in":  (jax.random.normal(ks[1], (1, 3 * D)) * s).astype(jnp.float32),
        "w_out": (jax.random.normal(ks[2], (D, D)) * s).astype(jnp.float32),
        "b_out": (jax.random.normal(ks[3], (1, D)) * s).astype(jnp.float32),
        "ln1_g": jnp.ones((1, D), jnp.float32),
        "ln1_b": jnp.zeros((1, D), jnp.float32),
        "w1":    (jax.random.normal(ks[4], (D, F)) * s).astype(jnp.float32),
        "b1":    (jax.random.normal(ks[5], (1, F)) * s).astype(jnp.float32),
        "w2":    (jax.random.normal(ks[6], (F, D)) * s).astype(jnp.float32),
        "b2":    (jax.random.normal(ks[7], (1, D)) * s).astype(jnp.float32),
        "ln2_g": jnp.ones((1, D), jnp.float32),
        "ln2_b": jnp.zeros((1, D), jnp.float32),
    }


def reference_encoder(x, p, *, n_heads):
    """Pure-JAX f32 reference matching the PyTorch module (eval mode)."""
    B, S, D = x.shape
    d_k = D // n_heads
    qkv = x @ p["w_in"] + p["b_in"][0]
    q, k, v = jnp.split(qkv, 3, axis=-1)

    def to_heads(t):
        return t.reshape(B, S, n_heads, d_k).transpose(0, 2, 1, 3)  # b h s d

    q, k, v = map(to_heads, (q, k, v))
    scores = jnp.einsum("bhsd,bhld->bhsl", q, k) / math.sqrt(d_k)
    w = jax.nn.softmax(scores, axis=-1)
    a = jnp.einsum("bhsl,bhld->bhsd", w, v).transpose(0, 2, 1, 3).reshape(B, S, D)
    a = a @ p["w_out"] + p["b_out"][0]

    def ln(y, g, b):
        m = jnp.mean(y, axis=-1, keepdims=True)
        v_ = jnp.mean(jnp.square(y - m), axis=-1, keepdims=True)
        return (y - m) / jnp.sqrt(v_ + LN_EPS) * g[0] + b[0]

    h1 = ln(a + x, p["ln1_g"], p["ln1_b"])
    ff = _gelu_exact(h1 @ p["w1"] + p["b1"][0]) @ p["w2"] + p["b2"][0]
    return ln(ff + h1, p["ln2_g"], p["ln2_b"])


if __name__ == "__main__":
    B, S, D = 2, 8, 32
    n_heads, ff_hidden_dim = 4, 64

    key = jax.random.PRNGKey(0)
    kx, kp = jax.random.split(key)
    x = jax.random.normal(kx, (B, S, D), dtype=jnp.float32)
    params = make_params(kp, D, n_heads, ff_hidden_dim)

    out = transformer_encoder(x, params, n_heads=n_heads)
    out = jax.block_until_ready(out)

    ref = reference_encoder(x, params, n_heads=n_heads)
    assert out.shape == (B, S, D)
    # bf16 matmul operands (f32 accumulation) => relaxed tolerance vs f32 ref.
    max_err = float(jnp.max(jnp.abs(out - ref)))
    assert jnp.allclose(out, ref, atol=2e-2, rtol=2e-2), \
        f"mismatch vs reference (max abs err {max_err})"

    print("KERNEL_OK")
</pallas_src>

<mosaic_0001>
module attributes {stable_mosaic.version = 11 : i64} {
  func.func @_encoder_kernel(%arg0: i32, %arg1: memref<1x8x32xf32, #tpu.memory_space<vmem>>, %arg2: memref<32x96xbf16, #tpu.memory_space<vmem>>, %arg3: memref<1x96xf32, #tpu.memory_space<vmem>>, %arg4: memref<32x32xbf16, #tpu.memory_space<vmem>>, %arg5: memref<1x32xf32, #tpu.memory_space<vmem>>, %arg6: memref<1x32xf32, #tpu.memory_space<vmem>>, %arg7: memref<1x32xf32, #tpu.memory_space<vmem>>, %arg8: memref<32x64xbf16, #tpu.memory_space<vmem>>, %arg9: memref<1x64xf32, #tpu.memory_space<vmem>>, %arg10: memref<64x32xbf16, #tpu.memory_space<vmem>>, %arg11: memref<1x32xf32, #tpu.memory_space<vmem>>, %arg12: memref<1x32xf32, #tpu.memory_space<vmem>>, %arg13: memref<1x32xf32, #tpu.memory_space<vmem>>, %arg14: memref<1x8x32xf32, #tpu.memory_space<vmem>>) attributes {dimension_semantics = [#tpu.dimension_semantics<parallel>], iteration_bounds = array<i64: 2>, scalar_prefetch = 0 : i64, scratch_operands = 0 : i64, tpu.core_type = #tpu.core_type<tc>, window_params = [{transform_indices = @transform_0, window_bounds = array<i64: 1, 8, 32>}, {pipeline_mode = #tpu.pipeline_mode<synchronous>, transform_indices = @transform_1, window_bounds = array<i64: 32, 96>}, {pipeline_mode = #tpu.pipeline_mode<synchronous>, transform_indices = @transform_2, window_bounds = array<i64: 1, 96>}, {pipeline_mode = #tpu.pipeline_mode<synchronous>, transform_indices = @transform_3, window_bounds = array<i64: 32, 32>}, {pipeline_mode = #tpu.pipeline_mode<synchronous>, transform_indices = @transform_4, window_bounds = array<i64: 1, 32>}, {pipeline_mode = #tpu.pipeline_mode<synchronous>, transform_indices = @transform_5, window_bounds = array<i64: 1, 32>}, {pipeline_mode = #tpu.pipeline_mode<synchronous>, transform_indices = @transform_6, window_bounds = array<i64: 1, 32>}, {pipeline_mode = #tpu.pipeline_mode<synchronous>, transform_indices = @transform_7, window_bounds = array<i64: 32, 64>}, {pipeline_mode = #tpu.pipeline_mode<synchronous>, transform_indices = @transform_8, window_bounds = array<i64: 1, 64>}, {pipeline_mode = #tpu.pipeline_mode<synchronous>, transform_indices = @transform_9, window_bounds = array<i64: 64, 32>}, {pipeline_mode = #tpu.pipeline_mode<synchronous>, transform_indices = @transform_10, window_bounds = array<i64: 1, 32>}, {pipeline_mode = #tpu.pipeline_mode<synchronous>, transform_indices = @transform_11, window_bounds = array<i64: 1, 32>}, {pipeline_mode = #tpu.pipeline_mode<synchronous>, transform_indices = @transform_12, window_bounds = array<i64: 1, 32>}, {transform_indices = @transform_13, window_bounds = array<i64: 1, 8, 32>}]} {
    %c0 = arith.constant 0 : index
    %c0_0 = arith.constant 0 : index
    %c0_1 = arith.constant 0 : index
    %0 = vector.load %arg1[%c0, %c0_0, %c0_1] : memref<1x8x32xf32, #tpu.memory_space<vmem>>, vector<1x8x32xf32>
    %1 = vector.shape_cast %0 : vector<1x8x32xf32> to vector<8x32xf32>
    %2 = arith.truncf %1 : vector<8x32xf32> to vector<8x32xbf16>
    %c0_2 = arith.constant 0 : index
    %c0_3 = arith.constant 0 : index
    %3 = vector.load %arg2[%c0_2, %c0_3] : memref<32x96xbf16, #tpu.memory_space<vmem>>, vector<32x96xbf16>
    %cst = arith.constant dense<0.000000e+00> : vector<8x96xf32>
    %4 = tpu.matmul %2, %3, %cst {dimension_numbers = #tpu.dot_dimension_numbers<[1], [0], [0], [1], [0, 0, 1, 1], [], []>} : vector<8x32xbf16>, vector<32x96xbf16>, vector<8x96xf32> -> vector<8x96xf32>
    %c0_4 = arith.constant 0 : index
    %c0_5 = arith.constant 0 : index
    %5 = vector.load %arg3[%c0_4, %c0_5] : memref<1x96xf32, #tpu.memory_space<vmem>>, vector<1x96xf32>
    %6 = vector.broadcast %5 : vector<1x96xf32> to vector<8x96xf32>
    %7 = arith.addf %4, %6 : vector<8x96xf32>
    %8 = vector.extract_strided_slice %7 {offsets = [0, 0], sizes = [8, 8], strides = [1, 1]} : vector<8x96xf32> to vector<8x8xf32>
    %9 = vector.extract_strided_slice %7 {offsets = [0, 8], sizes = [8, 8], strides = [1, 1]} : vector<8x96xf32> to vector<8x8xf32>
    %10 = vector.extract_strided_slice %7 {offsets = [0, 16], sizes = [8, 8], strides = [1, 1]} : vector<8x96xf32> to vector<8x8xf32>
    %11 = vector.extract_strided_slice %7 {offsets = [0, 24], sizes = [8, 8], strides = [1, 1]} : vector<8x96xf32> to vector<8x8xf32>
    %12 = vector.shape_cast %8 : vector<8x8xf32> to vector<1x8x8xf32>
    %13 = vector.shape_cast %9 : vector<8x8xf32> to vector<1x8x8xf32>
    %14 = vector.shape_cast %10 : vector<8x8xf32> to vector<1x8x8xf32>
    %15 = vector.shape_cast %11 : vector<8x8xf32> to vector<1x8x8xf32>
    %16 = tpu.concatenate %12, %13, %14, %15 in 0 : vector<1x8x8xf32>, vector<1x8x8xf32>, vector<1x8x8xf32>, vector<1x8x8xf32> -> vector<4x8x8xf32>
    %17 = arith.truncf %16 : vector<4x8x8xf32> to vector<4x8x8xbf16>
    %18 = vector.extract_strided_slice %7 {offsets = [0, 32], sizes = [8, 8], strides = [1, 1]} : vector<8x96xf32> to vector<8x8xf32>
    %19 = vector.extract_strided_slice %7 {offsets = [0, 40], sizes = [8, 8], strides = [1, 1]} : vector<8x96xf32> to vector<8x8xf32>
    %20 = vector.extract_strided_slice %7 {offsets = [0, 48], sizes = [8, 8], strides = [1, 1]} : vector<8x96xf32> to vector<8x8xf32>
    %21 = vector.extract_strided_slice %7 {offsets = [0, 56], sizes = [8, 8], strides = [1, 1]} : vector<8x96xf32> to vector<8x8xf32>
    %22 = vector.shape_cast %18 : vector<8x8xf32> to vector<1x8x8xf32>
    %23 = vector.shape_cast %19 : vector<8x8xf32> to vector<1x8x8xf32>
    %24 = vector.shape_cast %20 : vector<8x8xf32> to vector<1x8x8xf32>
    %25 = vector.shape_cast %21 : vector<8x8xf32> to vector<1x8x8xf32>
    %26 = tpu.concatenate %22, %23, %24, %25 in 0 : vector<1x8x8xf32>, vector<1x8x8xf32>, vector<1x8x8xf32>, vector<1x8x8xf32> -> vector<4x8x8xf32>
    %27 = arith.truncf %26 : vector<4x8x8xf32> to vector<4x8x8xbf16>
    %28 = vector.extract_strided_slice %7 {offsets = [0, 64], sizes = [8, 8], strides = [1, 1]} : vector<8x96xf32> to vector<8x8xf32>
    %29 = vector.extract_strided_slice %7 {offsets = [0, 72], sizes = [8, 8], strides = [1, 1]} : vector<8x96xf32> to vector<8x8xf32>
    %30 = vector.extract_strided_slice %7 {offsets = [0, 80], sizes = [8, 8], strides = [1, 1]} : vector<8x96xf32> to vector<8x8xf32>
    %31 = vector.extract_strided_slice %7 {offsets = [0, 88], sizes = [8, 8], strides = [1, 1]} : vector<8x96xf32> to vector<8x8xf32>
    %32 = vector.shape_cast %28 : vector<8x8xf32> to vector<1x8x8xf32>
    %33 = vector.shape_cast %29 : vector<8x8xf32> to vector<1x8x8xf32>
    %34 = vector.shape_cast %30 : vector<8x8xf32> to vector<1x8x8xf32>
    %35 = vector.shape_cast %31 : vector<8x8xf32> to vector<1x8x8xf32>
    %36 = tpu.concatenate %32, %33, %34, %35 in 0 : vector<1x8x8xf32>, vector<1x8x8xf32>, vector<1x8x8xf32>, vector<1x8x8xf32> -> vector<4x8x8xf32>
    %37 = arith.truncf %36 : vector<4x8x8xf32> to vector<4x8x8xbf16>
    "tpu.trace_start"() <{level = 10 : i32, message = "hqd,hkd->hqk"}> : () -> ()
    %cst_6 = arith.constant dense<0.000000e+00> : vector<4x8x8xf32>
    %38 = tpu.matmul %17, %27, %cst_6 {dimension_numbers = #tpu.dot_dimension_numbers<[2], [2], [1], [1], [0, 0, 0, 1, 1, 1], [0], [0]>} : vector<4x8x8xbf16>, vector<4x8x8xbf16>, vector<4x8x8xf32> -> vector<4x8x8xf32>
    "tpu.trace_stop"() : () -> ()
    %cst_7 = arith.constant dense<0xFF800000> : vector<4x8xf32>
    %39 = vector.multi_reduction <maximumf>, %38, %cst_7 [2] : vector<4x8x8xf32> to vector<4x8xf32>
    %40 = vector.shape_cast %39 : vector<4x8xf32> to vector<4x8x1xf32>
    %41 = vector.broadcast %40 : vector<4x8x1xf32> to vector<4x8x8xf32>
    %42 = arith.subf %38, %41 : vector<4x8x8xf32>
    %43 = math.exp %42 : vector<4x8x8xf32>
    %cst_8 = arith.constant dense<0.000000e+00> : vector<4x8xf32>
    %44 = vector.multi_reduction <add>, %43, %cst_8 [2] : vector<4x8x8xf32> to vector<4x8xf32>
    %45 = vector.shape_cast %44 : vector<4x8xf32> to vector<4x8x1xf32>
    %46 = tpu.reciprocal %45 {approx = true} : vector<4x8x1xf32> -> vector<4x8x1xf32>
    %47 = vector.broadcast %46 : vector<4x8x1xf32> to vector<4x8x8xf32>
    %48 = arith.mulf %43, %47 : vector<4x8x8xf32>
    %49 = arith.truncf %48 : vector<4x8x8xf32> to vector<4x8x8xbf16>
    "tpu.trace_start"() <{level = 10 : i32, message = "hqk,hkd->hqd"}> : () -> ()
    %cst_9 = arith.constant dense<0.000000e+00> : vector<4x8x8xf32>
    %50 = tpu.matmul %49, %37, %cst_9 {dimension_numbers = #tpu.dot_dimension_numbers<[2], [1], [1], [2], [0, 0, 0, 1, 1, 2], [0], [0]>} : vector<4x8x8xbf16>, vector<4x8x8xbf16>, vector<4x8x8xf32> -> vector<4x8x8xf32>
    "tpu.trace_stop"() : () -> ()
    %51 = vector.extract_strided_slice %50 {offsets = [0, 0, 0], sizes = [1, 8, 8], strides = [1, 1, 1]} : vector<4x8x8xf32> to vector<1x8x8xf32>
    %52 = vector.shape_cast %51 : vector<1x8x8xf32> to vector<8x8xf32>
    %53 = vector.extract_strided_slice %50 {offsets = [1, 0, 0], sizes = [1, 8, 8], strides = [1, 1, 1]} : vector<4x8x8xf32> to vector<1x8x8xf32>
    %54 = vector.shape_cast %53 : vector<1x8x8xf32> to vector<8x8xf32>
    %55 = vector.extract_strided_slice %50 {offsets = [2, 0, 0], sizes = [1, 8, 8], strides = [1, 1, 1]} : vector<4x8x8xf32> to vector<1x8x8xf32>
    %56 = vector.shape_cast %55 : vector<1x8x8xf32> to vector<8x8xf32>
    %57 = vector.extract_strided_slice %50 {offsets = [3, 0, 0], sizes = [1, 8, 8], strides = [1, 1, 1]} : vector<4x8x8xf32> to vector<1x8x8xf32>
    %58 = vector.shape_cast %57 : vector<1x8x8xf32> to vector<8x8xf32>
    %59 = tpu.concatenate %52, %54, %56, %58 in 1 : vector<8x8xf32>, vector<8x8xf32>, vector<8x8xf32>, vector<8x8xf32> -> vector<8x32xf32>
    %60 = arith.truncf %59 : vector<8x32xf32> to vector<8x32xbf16>
    %c0_10 = arith.constant 0 : index
    %c0_11 = arith.constant 0 : index
    %61 = vector.load %arg4[%c0_10, %c0_11] : memref<32x32xbf16, #tpu.memory_space<vmem>>, vector<32x32xbf16>
    %cst_12 = arith.constant dense<0.000000e+00> : vector<8x32xf32>
    %62 = tpu.matmul %60, %61, %cst_12 {dimension_numbers = #tpu.dot_dimension_numbers<[1], [0], [0], [1], [0, 0, 1, 1], [], []>} : vector<8x32xbf16>, vector<32x32xbf16>, vector<8x32xf32> -> vector<8x32xf32>
    %c0_13 = arith.constant 0 : index
    %c0_14 = arith.constant 0 : index
    %63 = vector.load %arg5[%c0_13, %c0_14] : memref<1x32xf32, #tpu.memory_space<vmem>>, vector<1x32xf32>
    %64 = vector.broadcast %63 : vector<1x32xf32> to vector<8x32xf32>
    %65 = arith.addf %62, %64 : vector<8x32xf32>
    %66 = arith.addf %65, %1 : vector<8x32xf32>
    %c0_15 = arith.constant 0 : index
    %c0_16 = arith.constant 0 : index
    %67 = vector.load %arg6[%c0_15, %c0_16] : memref<1x32xf32, #tpu.memory_space<vmem>>, vector<1x32xf32>
    %c0_17 = arith.constant 0 : index
    %c0_18 = arith.constant 0 : index
    %68 = vector.load %arg7[%c0_17, %c0_18] : memref<1x32xf32, #tpu.memory_space<vmem>>, vector<1x32xf32>
    %cst_19 = arith.constant dense<0.000000e+00> : vector<8xf32>
    %69 = vector.multi_reduction <add>, %66, %cst_19 [1] : vector<8x32xf32> to vector<8xf32>
    %70 = vector.shape_cast %69 : vector<8xf32> to vector<8x1xf32>
    %cst_20 = arith.constant 3.200000e+01 : f32
    %71 = vector.broadcast %cst_20 : f32 to vector<8x1xf32>
    %72 = arith.divf %70, %71 : vector<8x1xf32>
    %73 = vector.broadcast %72 : vector<8x1xf32> to vector<8x32xf32>
    %74 = arith.subf %66, %73 : vector<8x32xf32>
    %75 = arith.mulf %74, %74 : vector<8x32xf32>
    %cst_21 = arith.constant dense<0.000000e+00> : vector<8xf32>
    %76 = vector.multi_reduction <add>, %75, %cst_21 [1] : vector<8x32xf32> to vector<8xf32>
    %77 = vector.shape_cast %76 : vector<8xf32> to vector<8x1xf32>
    %cst_22 = arith.constant 3.200000e+01 : f32
    %78 = vector.broadcast %cst_22 : f32 to vector<8x1xf32>
    %79 = arith.divf %77, %78 : vector<8x1xf32>
    %cst_23 = arith.constant 9.99999974E-6 : f32
    %80 = vector.broadcast %cst_23 : f32 to vector<8x1xf32>
    %81 = arith.addf %79, %80 : vector<8x1xf32>
    %82 = math.rsqrt %81 : vector<8x1xf32>
    %83 = vector.broadcast %72 : vector<8x1xf32> to vector<8x32xf32>
    %84 = arith.subf %66, %83 : vector<8x32xf32>
    %85 = vector.broadcast %82 : vector<8x1xf32> to vector<8x32xf32>
    %86 = arith.mulf %84, %85 : vector<8x32xf32>
    %87 = vector.broadcast %67 : vector<1x32xf32> to vector<8x32xf32>
    %88 = arith.mulf %86, %87 : vector<8x32xf32>
    %89 = vector.broadcast %68 : vector<1x32xf32> to vector<8x32xf32>
    %90 = arith.addf %88, %89 : vector<8x32xf32>
    %91 = arith.truncf %90 : vector<8x32xf32> to vector<8x32xbf16>
    %c0_24 = arith.constant 0 : index
    %c0_25 = arith.constant 0 : index
    %92 = vector.load %arg8[%c0_24, %c0_25] : memref<32x64xbf16, #tpu.memory_space<vmem>>, vector<32x64xbf16>
    %cst_26 = arith.constant dense<0.000000e+00> : vector<8x64xf32>
    %93 = tpu.matmul %91, %92, %cst_26 {dimension_numbers = #tpu.dot_dimension_numbers<[1], [0], [0], [1], [0, 0, 1, 1], [], []>} : vector<8x32xbf16>, vector<32x64xbf16>, vector<8x64xf32> -> vector<8x64xf32>
    %c0_27 = arith.constant 0 : index
    %c0_28 = arith.constant 0 : index
    %94 = vector.load %arg9[%c0_27, %c0_28] : memref<1x64xf32, #tpu.memory_space<vmem>>, vector<1x64xf32>
    %95 = vector.broadcast %94 : vector<1x64xf32> to vector<8x64xf32>
    %96 = arith.addf %93, %95 : vector<8x64xf32>
    %cst_29 = arith.constant 5.000000e-01 : f32
    %97 = vector.broadcast %cst_29 : f32 to vector<8x64xf32>
    %98 = arith.mulf %97, %96 : vector<8x64xf32>
    %cst_30 = arith.constant 0.707106769 : f32
    %99 = vector.broadcast %cst_30 : f32 to vector<8x64xf32>
    %100 = arith.mulf %96, %99 : vector<8x64xf32>
    %101 = math.erf %100 : vector<8x64xf32>
    %cst_31 = arith.constant 1.000000e+00 : f32
    %102 = vector.broadcast %cst_31 : f32 to vector<8x64xf32>
    %103 = arith.addf %102, %101 : vector<8x64xf32>
    %104 = arith.mulf %98, %103 : vector<8x64xf32>
    %105 = arith.truncf %104 : vector<8x64xf32> to vector<8x64xbf16>
    %c0_32 = arith.constant 0 : index
    %c0_33 = arith.constant 0 : index
    %106 = vector.load %arg10[%c0_32, %c0_33] : memref<64x32xbf16, #tpu.memory_space<vmem>>, vector<64x32xbf16>
    %cst_34 = arith.constant dense<0.000000e+00> : vector<8x32xf32>
    %107 = tpu.matmul %105, %106, %cst_34 {dimension_numbers = #tpu.dot_dimension_numbers<[1], [0], [0], [1], [0, 0, 1, 1], [], []>} : vector<8x64xbf16>, vector<64x32xbf16>, vector<8x32xf32> -> vector<8x32xf32>
    %c0_35 = arith.constant 0 : index
    %c0_36 = arith.constant 0 : index
    %108 = vector.load %arg11[%c0_35, %c0_36] : memref<1x32xf32, #tpu.memory_space<vmem>>, vector<1x32xf32>
    %109 = vector.broadcast %108 : vector<1x32xf32> to vector<8x32xf32>
    %110 = arith.addf %107, %109 : vector<8x32xf32>
    %111 = arith.addf %110, %90 : vector<8x32xf32>
    %c0_37 = arith.constant 0 : index
    %c0_38 = arith.constant 0 : index
    %112 = vector.load %arg12[%c0_37, %c0_38] : memref<1x32xf32, #tpu.memory_space<vmem>>, vector<1x32xf32>
    %c0_39 = arith.constant 0 : index
    %c0_40 = arith.constant 0 : index
    %113 = vector.load %arg13[%c0_39, %c0_40] : memref<1x32xf32, #tpu.memory_space<vmem>>, vector<1x32xf32>
    %cst_41 = arith.constant dense<0.000000e+00> : vector<8xf32>
    %114 = vector.multi_reduction <add>, %111, %cst_41 [1] : vector<8x32xf32> to vector<8xf32>
    %115 = vector.shape_cast %114 : vector<8xf32> to vector<8x1xf32>
    %cst_42 = arith.constant 3.200000e+01 : f32
    %116 = vector.broadcast %cst_42 : f32 to vector<8x1xf32>
    %117 = arith.divf %115, %116 : vector<8x1xf32>
    %118 = vector.broadcast %117 : vector<8x1xf32> to vector<8x32xf32>
    %119 = arith.subf %111, %118 : vector<8x32xf32>
    %120 = arith.mulf %119, %119 : vector<8x32xf32>
    %cst_43 = arith.constant dense<0.000000e+00> : vector<8xf32>
    %121 = vector.multi_reduction <add>, %120, %cst_43 [1] : vector<8x32xf32> to vector<8xf32>
    %122 = vector.shape_cast %121 : vector<8xf32> to vector<8x1xf32>
    %cst_44 = arith.constant 3.200000e+01 : f32
    %123 = vector.broadcast %cst_44 : f32 to vector<8x1xf32>
    %124 = arith.divf %122, %123 : vector<8x1xf32>
    %cst_45 = arith.constant 9.99999974E-6 : f32
    %125 = vector.broadcast %cst_45 : f32 to vector<8x1xf32>
    %126 = arith.addf %124, %125 : vector<8x1xf32>
    %127 = math.rsqrt %126 : vector<8x1xf32>
    %128 = vector.broadcast %117 : vector<8x1xf32> to vector<8x32xf32>
    %129 = arith.subf %111, %128 : vector<8x32xf32>
    %130 = vector.broadcast %127 : vector<8x1xf32> to vector<8x32xf32>
    %131 = arith.mulf %129, %130 : vector<8x32xf32>
    %132 = vector.broadcast %112 : vector<1x32xf32> to vector<8x32xf32>
    %133 = arith.mulf %131, %132 : vector<8x32xf32>
    %134 = vector.broadcast %113 : vector<1x32xf32> to vector<8x32xf32>
    %135 = arith.addf %133, %134 : vector<8x32xf32>
    %c0_46 = arith.constant 0 : index
    %c0_47 = arith.constant 0 : index
    %c0_48 = arith.constant 0 : index
    %136 = vector.load %arg14[%c0_46, %c0_47, %c0_48] : memref<1x8x32xf32, #tpu.memory_space<vmem>>, vector<1x8x32xf32>
    %137 = vector.shape_cast %136 : vector<1x8x32xf32> to vector<8x32xf32>
    %138 = vector.shape_cast %135 : vector<8x32xf32> to vector<1x8x32xf32>
    tpu.vector_store %arg14[%c0_46, %c0_47, %c0_48], %138 {strides = array<i32>} : memref<1x8x32xf32, #tpu.memory_space<vmem>>, vector<1x8x32xf32>,
    return
  }
  func.func @transform_0(%arg0: i32) -> (i32, i32, i32) {
    %c0_i32 = arith.constant 0 : i32
    %c0_i32_0 = arith.constant 0 : i32
    %c0_i32_1 = arith.constant 0 : i32
    return %arg0, %c0_i32, %c0_i32_0 : i32, i32, i32
  }
  func.func @transform_1(%arg0: i32) -> (i32, i32) {
    %c0_i32 = arith.constant 0 : i32
    %c0_i32_0 = arith.constant 0 : i32
    %c0_i32_1 = arith.constant 0 : i32
    return %c0_i32, %c0_i32_0 : i32, i32
  }
  func.func @transform_2(%arg0: i32) -> (i32, i32) {
    %c0_i32 = arith.constant 0 : i32
    %c0_i32_0 = arith.constant 0 : i32
    %c0_i32_1 = arith.constant 0 : i32
    return %c0_i32, %c0_i32_0 : i32, i32
  }
  func.func @transform_3(%arg0: i32) -> (i32, i32) {
    %c0_i32 = arith.constant 0 : i32
    %c0_i32_0 = arith.constant 0 : i32
    %c0_i32_1 = arith.constant 0 : i32
    return %c0_i32, %c0_i32_0 : i32, i32
  }
  func.func @transform_4(%arg0: i32) -> (i32, i32) {
    %c0_i32 = arith.constant 0 : i32
    %c0_i32_0 = arith.constant 0 : i32
    %c0_i32_1 = arith.constant 0 : i32
    return %c0_i32, %c0_i32_0 : i32, i32
  }
  func.func @transform_5(%arg0: i32) -> (i32, i32) {
    %c0_i32 = arith.constant 0 : i32
    %c0_i32_0 = arith.constant 0 : i32
    %c0_i32_1 = arith.constant 0 : i32
    return %c0_i32, %c0_i32_0 : i32, i32
  }
  func.func @transform_6(%arg0: i32) -> (i32, i32) {
    %c0_i32 = arith.constant 0 : i32
    %c0_i32_0 = arith.constant 0 : i32
    %c0_i32_1 = arith.constant 0 : i32
    return %c0_i32, %c0_i32_0 : i32, i32
  }
  func.func @transform_7(%arg0: i32) -> (i32, i32) {
    %c0_i32 = arith.constant 0 : i32
    %c0_i32_0 = arith.constant 0 : i32
    %c0_i32_1 = arith.constant 0 : i32
    return %c0_i32, %c0_i32_0 : i32, i32
  }
  func.func @transform_8(%arg0: i32) -> (i32, i32) {
    %c0_i32 = arith.constant 0 : i32
    %c0_i32_0 = arith.constant 0 : i32
    %c0_i32_1 = arith.constant 0 : i32
    return %c0_i32, %c0_i32_0 : i32, i32
  }
  func.func @transform_9(%arg0: i32) -> (i32, i32) {
    %c0_i32 = arith.constant 0 : i32
    %c0_i32_0 = arith.constant 0 : i32
    %c0_i32_1 = arith.constant 0 : i32
    return %c0_i32, %c0_i32_0 : i32, i32
  }
  func.func @transform_10(%arg0: i32) -> (i32, i32) {
    %c0_i32 = arith.constant 0 : i32
    %c0_i32_0 = arith.constant 0 : i32
    %c0_i32_1 = arith.constant 0 : i32
    return %c0_i32, %c0_i32_0 : i32, i32
  }
  func.func @transform_11(%arg0: i32) -> (i32, i32) {
    %c0_i32 = arith.constant 0 : i32
    %c0_i32_0 = arith.constant 0 : i32
    %c0_i32_1 = arith.constant 0 : i32
    return %c0_i32, %c0_i32_0 : i32, i32
  }
  func.func @transform_12(%arg0: i32) -> (i32, i32) {
    %c0_i32 = arith.constant 0 : i32
    %c0_i32_0 = arith.constant 0 : i32
    %c0_i32_1 = arith.constant 0 : i32
    return %c0_i32, %c0_i32_0 : i32, i32
  }
  func.func @transform_13(%arg0: i32) -> (i32, i32, i32) {
    %c0_i32 = arith.constant 0 : i32
    %c0_i32_0 = arith.constant 0 : i32
    %c0_i32_1 = arith.constant 0 : i32
    return %arg0, %c0_i32, %c0_i32_0 : i32, i32, i32
  }
}

</mosaic_0001>

<llo_original>
// kernel: tpu_custom_call.1
$region0: #{tpu_custom_call.1}
  #allocation0 [shape = 'u32[]', space=smem, size = 0x4, offset = 0x4, fixed_abs, tag = 'smem constant byte address 0x4 - core index']
  #allocation1 [shape = 'u32[144,128]{1,0:T(1,128)}', space=vmem, size = 0x12000, scoped, tag = 'internal scratch']
  %s0 = inlined_call_operand.vmem [shape: f32[2,8,32], index: 0, kind: input, shape index: {}]
  %s1 = inlined_call_operand.vmem [shape: bf16[32,96], index: 1, kind: input, shape index: {}]
  %s2 = inlined_call_operand.vmem [shape: f32[1,96], index: 2, kind: input, shape index: {}]
  %s3 = inlined_call_operand.vmem [shape: bf16[32,32], index: 3, kind: input, shape index: {}]
  %s4 = inlined_call_operand.vmem [shape: f32[1,32], index: 4, kind: input, shape index: {}]
  %s5 = inlined_call_operand.vmem [shape: f32[1,32], index: 5, kind: input, shape index: {}]
  %s6 = inlined_call_operand.vmem [shape: f32[1,32], index: 6, kind: input, shape index: {}]
  %s7 = inlined_call_operand.hbm [shape: bf16[32,64], index: 7, kind: input, shape index: {}]
  %s8 = inlined_call_operand.vmem [shape: f32[1,64], index: 8, kind: input, shape index: {}]
  %s9 = inlined_call_operand.vmem [shape: bf16[64,32], index: 9, kind: input, shape index: {}]
  %s10 = inlined_call_operand.vmem [shape: f32[1,32], index: 10, kind: input, shape index: {}]
  %s11 = inlined_call_operand.vmem [shape: f32[1,32], index: 11, kind: input, shape index: {}]
  %s12 = inlined_call_operand.vmem [shape: f32[1,32], index: 12, kind: input, shape index: {}]
  %s13 = inlined_call_operand.hbm [shape: f32[2,8,32], index: 13, kind: output, shape index: {}]
  %s14 = sld [smem:[#allocation0]]
  $region89: #{tpu_custom_call.1} parent=0
    _
  %s16 = ssub.s32 1, %s14
  %s17 = scalar_select 0, %s16, %s14
  $region1: #{tpu_custom_call.1} parent=0
    #allocation2 [shape = 'u8[8192]{0}', space=vmem, size = 0x2000, scoped, tag = 'input window, operand 7, single buffered']
    #allocation3 [shape = 's32[2]{0}', space=sflag, size = 0x8, scoped, tag = 'scoped memory for tpu_custom_call.1']
    #allocation4 [shape = 's32[2]{0}', space=sflag, size = 0x8, scoped, tag = 'scoped memory for tpu_custom_call.1']
    #allocation5 [shape = 'u8[8192]{0}', space=vmem, size = 0x2000, scoped, tag = 'output window, operand 0']
    %18 = vsyncpa [#allocation3], 0
    %19 = vsyncpa [#allocation4], 0
    %s20 = scalar_lea.sflag [#allocation4], 1
    %21 = vsyncpa %s20, 0
    loop: start=0, step=1, limit=4
    $region2: #{tpu_custom_call.1} parent=1 // loop_pre_header
      _
    $region3: #{tpu_custom_call.1} parent=1 // loop_header
      %s23 = sphi 0, %s27
      %p24 = scmp.ge.s32.totalorder %s23, 4
      %s33 = sphi 0, %s35
      %s36 = sphi 0, %s33
      %s37 = sphi 0, %s36
      %s53 = sphi 0, %s37
      %s57 = sphi 0, %s57
      %s59 = sphi 0, %s57
      %s60 = sphi 0, %s59
      %s74 = sphi 0, %s60
      %s78 = sphi 0, %s78
      %s80 = sphi 0, %s78
      %s81 = sphi 0, %s80
      %s95 = sphi 0, %s81
      %s99 = sphi 0, %s99
      %s101 = sphi 0, %s99
      %s102 = sphi 0, %s101
      %s116 = sphi 0, %s102
      %s120 = sphi 0, %s120
      %s122 = sphi 0, %s120
      %s123 = sphi 0, %s122
      %s137 = sphi 0, %s123
      %s141 = sphi 0, %s141
      %s143 = sphi 0, %s141
      %s144 = sphi 0, %s143
      %s158 = sphi 0, %s144
      %s162 = sphi 0, %s162
      %s164 = sphi 0, %s162
      %s165 = sphi 0, %s164
      %s179 = sphi 0, %s165
      %s183 = sphi 0, %s183
      %s185 = sphi 0, %s183
      %s186 = sphi 0, %s185
      %s200 = sphi 0, %s186
      %s204 = sphi 0, %s204
      %s206 = sphi 0, %s204
      %s207 = sphi 0, %s206
      %s221 = sphi 0, %s207
      %s225 = sphi 0, %s225
      %s227 = sphi 0, %s225
      %s228 = sphi 0, %s227
      %s242 = sphi 0, %s228
      %s246 = sphi 0, %s246
      %s248 = sphi 0, %s246
      %s249 = sphi 0, %s248
      %s263 = sphi 0, %s249
      %s267 = sphi 0, %s267
      %s269 = sphi 0, %s267
      %s270 = sphi 0, %s269
      %s284 = sphi 0, %s270
      %s288 = sphi 0, %s288
      %s290 = sphi 0, %s288
      %s291 = sphi 0, %s290
      %s305 = sphi 0, %s291
      %s311 = sphi 0, %s313
      %s314 = sphi 0, %s311
      %s315 = sphi 0, %s314
      %s331 = sphi 0, %s315
    $region4: #{tpu_custom_call.1} parent=1 // loop_header_branch
      %26 = sbr.rel (%p24) target = $region8
    $region5: #{tpu_custom_call.1} parent=1 // loop_body
      %s28 = ssub.s32 %s23, 1
      %s29 = ssub.s32 %s23, 2
      %s30 = sadd.s32 %s23, 1
      %s31 = ssub.s32 %s23, %s30
      %p32 = scmp.eq.s32.totalorder %s31, 0
      %s34 = sadd.s32 %s33, 1
      %s35 = scalar_select %p32, %s33, %s34
      %p38 = pneg %p32
      %p39 = scmp.eq.s32.totalorder %s23, 1
      %p40 = por %p38, %p39
      %p41 = scmp.ne.s32.totalorder %s33, %s36
      %p42 = scmp.eq.s32.totalorder %s23, 0
      %p43 = por %p41, %p42
      %p44 = scmp.ne.s32.totalorder %s33, %s36
      %p45 = scmp.eq.s32.totalorder %s28, 1
      %p46 = por %p44, %p45
      %p47 = scmp.ne.s32.totalorder %s36, %s37
      %p48 = scmp.eq.s32.totalorder %s28, 0
      %p49 = por %p47, %p48
      %p50 = scmp.ne.s32.totalorder %s36, %s37
      %p51 = scmp.eq.s32.totalorder %s29, 1
      %p52 = por %p50, %p51
      %p54 = scmp.ne.s32.totalorder %s37, %s53
      %p55 = scmp.eq.s32.totalorder %s29, 0
      %p56 = por %p54, %p55
      %s58 = sadd.s32 %s57, 1
      %p61 = scmp.eq.s32.totalorder %s23, 1
      %p62 = scmp.ne.s32.totalorder %s57, %s59
      %p63 = scmp.eq.s32.totalorder %s23, 0
      %p64 = por %p62, %p63
      %p65 = scmp.ne.s32.totalorder %s57, %s59
      %p66 = scmp.eq.s32.totalorder %s28, 1
      %p67 = por %p65, %p66
      %p68 = scmp.ne.s32.totalorder %s59, %s60
      %p69 = scmp.eq.s32.totalorder %s28, 0
      %p70 = por %p68, %p69
      %p71 = scmp.ne.s32.totalorder %s59, %s60
      %p72 = scmp.eq.s32.totalorder %s29, 1
      %p73 = por %p71, %p72
      %p75 = scmp.ne.s32.totalorder %s60, %s74
      %p76 = scmp.eq.s32.totalorder %s29, 0
      %p77 = por %p75, %p76
      %s79 = sadd.s32 %s78, 1
      %p82 = scmp.eq.s32.totalorder %s23, 1
      %p83 = scmp.ne.s32.totalorder %s78, %s80
      %p84 = scmp.eq.s32.totalorder %s23, 0
      %p85 = por %p83, %p84
      %p86 = scmp.ne.s32.totalorder %s78, %s80
      %p87 = scmp.eq.s32.totalorder %s28, 1
      %p88 = por %p86, %p87
      %p89 = scmp.ne.s32.totalorder %s80, %s81
      %p90 = scmp.eq.s32.totalorder %s28, 0
      %p91 = por %p89, %p90
      %p92 = scmp.ne.s32.totalorder %s80, %s81
      %p93 = scmp.eq.s32.totalorder %s29, 1
      %p94 = por %p92, %p93
      %p96 = scmp.ne.s32.totalorder %s81, %s95
      %p97 = scmp.eq.s32.totalorder %s29, 0
      %p98 = por %p96, %p97
      %s100 = sadd.s32 %s99, 1
      %p103 = scmp.eq.s32.totalorder %s23, 1
      %p104 = scmp.ne.s32.totalorder %s99, %s101
      %p105 = scmp.eq.s32.totalorder %s23, 0
      %p106 = por %p104, %p105
      %p107 = scmp.ne.s32.totalorder %s99, %s101
      %p108 = scmp.eq.s32.totalorder %s28, 1
      %p109 = por %p107, %p108
      %p110 = scmp.ne.s32.totalorder %s101, %s102
      %p111 = scmp.eq.s32.totalorder %s28, 0
      %p112 = por %p110, %p111
      %p113 = scmp.ne.s32.totalorder %s101, %s102
      %p114 = scmp.eq.s32.totalorder %s29, 1
      %p115 = por %p113, %p114
      %p117 = scmp.ne.s32.totalorder %s102, %s116
      %p118 = scmp.eq.s32.totalorder %s29, 0
      %p119 = por %p117, %p118
      %s121 = sadd.s32 %s120, 1
      %p124 = scmp.eq.s32.totalorder %s23, 1
      %p125 = scmp.ne.s32.totalorder %s120, %s122
      %p126 = scmp.eq.s32.totalorder %s23, 0
      %p127 = por %p125, %p126
      %p128 = scmp.ne.s32.totalorder %s120, %s122
      %p129 = scmp.eq.s32.totalorder %s28, 1
      %p130 = por %p128, %p129
      %p131 = scmp.ne.s32.totalorder %s122, %s123
      %p132 = scmp.eq.s32.totalorder %s28, 0
      %p133 = por %p131, %p132
      %p134 = scmp.ne.s32.totalorder %s122, %s123
      %p135 = scmp.eq.s32.totalorder %s29, 1
      %p136 = por %p134, %p135
      %p138 = scmp.ne.s32.totalorder %s123, %s137
      %p139 = scmp.eq.s32.totalorder %s29, 0
      %p140 = por %p138, %p139
      %s142 = sadd.s32 %s141, 1
      %p145 = scmp.eq.s32.totalorder %s23, 1
      %p146 = scmp.ne.s32.totalorder %s141, %s143
      %p147 = scmp.eq.s32.totalorder %s23, 0
      %p148 = por %p146, %p147
      %p149 = scmp.ne.s32.totalorder %s141, %s143
      %p150 = scmp.eq.s32.totalorder %s28, 1
      %p151 = por %p149, %p150
      %p152 = scmp.ne.s32.totalorder %s143, %s144
      %p153 = scmp.eq.s32.totalorder %s28, 0
      %p154 = por %p152, %p153
      %p155 = scmp.ne.s32.totalorder %s143, %s144
      %p156 = scmp.eq.s32.totalorder %s29, 1
      %p157 = por %p155, %p156
      %p159 = scmp.ne.s32.totalorder %s144, %s158
      %p160 = scmp.eq.s32.totalorder %s29, 0
      %p161 = por %p159, %p160
      %s163 = sadd.s32 %s162, 1
      %p166 = scmp.eq.s32.totalorder %s23, 1
      %p167 = scmp.ne.s32.totalorder %s162, %s164
      %p168 = scmp.eq.s32.totalorder %s23, 0
      %p169 = por %p167, %p168
      %p170 = scmp.ne.s32.totalorder %s162, %s164
      %p171 = scmp.eq.s32.totalorder %s28, 1
      %p172 = por %p170, %p171
      %p173 = scmp.ne.s32.totalorder %s164, %s165
      %p174 = scmp.eq.s32.totalorder %s28, 0
      %p175 = por %p173, %p174
      %p176 = scmp.ne.s32.totalorder %s164, %s165
      %p177 = scmp.eq.s32.totalorder %s29, 1
      %p178 = por %p176, %p177
      %p180 = scmp.ne.s32.totalorder %s165, %s179
      %p181 = scmp.eq.s32.totalorder %s29, 0
      %p182 = por %p180, %p181
      %s184 = sadd.s32 %s183, 1
      %p187 = scmp.eq.s32.totalorder %s23, 1
      %p188 = scmp.ne.s32.totalorder %s183, %s185
      %p189 = scmp.eq.s32.totalorder %s23, 0
      %p190 = por %p188, %p189
      %p191 = scmp.ne.s32.totalorder %s183, %s185
      %p192 = scmp.eq.s32.totalorder %s28, 1
      %p193 = por %p191, %p192
      %p194 = scmp.ne.s32.totalorder %s185, %s186
      %p195 = scmp.eq.s32.totalorder %s28, 0
      %p196 = por %p194, %p195
      %p197 = scmp.ne.s32.totalorder %s185, %s186
      %p198 = scmp.eq.s32.totalorder %s29, 1
      %p199 = por %p197, %p198
      %p201 = scmp.ne.s32.totalorder %s186, %s200
      %p202 = scmp.eq.s32.totalorder %s29, 0
      %p203 = por %p201, %p202
      %s205 = sadd.s32 %s204, 1
      %p208 = scmp.eq.s32.totalorder %s23, 1
      %p209 = scmp.ne.s32.totalorder %s204, %s206
      %p210 = scmp.eq.s32.totalorder %s23, 0
      %p211 = por %p209, %p210
      %p212 = scmp.ne.s32.totalorder %s204, %s206
      %p213 = scmp.eq.s32.totalorder %s28, 1
      %p214 = por %p212, %p213
      %p215 = scmp.ne.s32.totalorder %s206, %s207
      %p216 = scmp.eq.s32.totalorder %s28, 0
      %p217 = por %p215, %p216
      %p218 = scmp.ne.s32.totalorder %s206, %s207
      %p219 = scmp.eq.s32.totalorder %s29, 1
      %p220 = por %p218, %p219
      %p222 = scmp.ne.s32.totalorder %s207, %s221
      %p223 = scmp.eq.s32.totalorder %s29, 0
      %p224 = por %p222, %p223
      %s226 = sadd.s32 %s225, 1
      %p229 = scmp.eq.s32.totalorder %s23, 1
      %p230 = scmp.ne.s32.totalorder %s225, %s227
      %p231 = scmp.eq.s32.totalorder %s23, 0
      %p232 = por %p230, %p231
      %p233 = scmp.ne.s32.totalorder %s225, %s227
      %p234 = scmp.eq.s32.totalorder %s28, 1
      %p235 = por %p233, %p234
      %p236 = scmp.ne.s32.totalorder %s227, %s228
      %p237 = scmp.eq.s32.totalorder %s28, 0
      %p238 = por %p236, %p237
      %p239 = scmp.ne.s32.totalorder %s227, %s228
      %p240 = scmp.eq.s32.totalorder %s29, 1
      %p241 = por %p239, %p240
      %p243 = scmp.ne.s32.totalorder %s228, %s242
      %p244 = scmp.eq.s32.totalorder %s29, 0
      %p245 = por %p243, %p244
      %s247 = sadd.s32 %s246, 1
      %p250 = scmp.eq.s32.totalorder %s23, 1
      %p251 = scmp.ne.s32.totalorder %s246, %s248
      %p252 = scmp.eq.s32.totalorder %s23, 0
      %p253 = por %p251, %p252
      %p254 = scmp.ne.s32.totalorder %s246, %s248
      %p255 = scmp.eq.s32.totalorder %s28, 1
      %p256 = por %p254, %p255
      %p257 = scmp.ne.s32.totalorder %s248, %s249
      %p258 = scmp.eq.s32.totalorder %s28, 0
      %p259 = por %p257, %p258
      %p260 = scmp.ne.s32.totalorder %s248, %s249
      %p261 = scmp.eq.s32.totalorder %s29, 1
      %p262 = por %p260, %p261
      %p264 = scmp.ne.s32.totalorder %s249, %s263
      %p265 = scmp.eq.s32.totalorder %s29, 0
      %p266 = por %p264, %p265
      %s268 = sadd.s32 %s267, 1
      %p271 = scmp.eq.s32.totalorder %s23, 1
      %p272 = scmp.ne.s32.totalorder %s267, %s269
      %p273 = scmp.eq.s32.totalorder %s23, 0
      %p274 = por %p272, %p273
      %p275 = scmp.ne.s32.totalorder %s267, %s269
      %p276 = scmp.eq.s32.totalorder %s28, 1
      %p277 = por %p275, %p276
      %p278 = scmp.ne.s32.totalorder %s269, %s270
      %p279 = scmp.eq.s32.totalorder %s28, 0
      %p280 = por %p278, %p279
      %p281 = scmp.ne.s32.totalorder %s269, %s270
      %p282 = scmp.eq.s32.totalorder %s29, 1
      %p283 = por %p281, %p282
      %p285 = scmp.ne.s32.totalorder %s270, %s284
      %p286 = scmp.eq.s32.totalorder %s29, 0
      %p287 = por %p285, %p286
      %s289 = sadd.s32 %s288, 1
      %p292 = scmp.eq.s32.totalorder %s23, 1
      %p293 = scmp.ne.s32.totalorder %s288, %s290
      %p294 = scmp.eq.s32.totalorder %s23, 0
      %p295 = por %p293, %p294
      %p296 = scmp.ne.s32.totalorder %s288, %s290
      %p297 = scmp.eq.s32.totalorder %s28, 1
      %p298 = por %p296, %p297
      %p299 = scmp.ne.s32.totalorder %s290, %s291
      %p300 = scmp.eq.s32.totalorder %s28, 0
      %p301 = por %p299, %p300
      %p302 = scmp.ne.s32.totalorder %s290, %s291
      %p303 = scmp.eq.s32.totalorder %s29, 1
      %p304 = por %p302, %p303
      %p306 = scmp.ne.s32.totalorder %s291, %s305
      %p307 = scmp.eq.s32.totalorder %s29, 0
      %p308 = por %p306, %p307
      %s309 = ssub.s32 %s23, %s30
      %p310 = scmp.eq.s32.totalorder %s309, 0
      %s312 = sadd.s32 %s311, 1
      %s313 = scalar_select %p310, %s311, %s312
      %p316 = pneg %p310
      %p317 = scmp.eq.s32.totalorder %s23, 1
      %p318 = por %p316, %p317
      %p319 = scmp.ne.s32.totalorder %s311, %s314
      %p320 = scmp.eq.s32.totalorder %s23, 0
      %p321 = por %p319, %p320
      %p322 = scmp.ne.s32.totalorder %s311, %s314
      %p323 = scmp.eq.s32.totalorder %s28, 1
      %p324 = por %p322, %p323
      %p325 = scmp.ne.s32.totalorder %s314, %s315
      %p326 = scmp.eq.s32.totalorder %s28, 0
      %p327 = por %p325, %p326
      %p328 = scmp.ne.s32.totalorder %s314, %s315
      %p329 = scmp.eq.s32.totalorder %s29, 1
      %p330 = por %p328, %p329
      %p332 = scmp.ne.s32.totalorder %s315, %s331
      %p333 = scmp.eq.s32.totalorder %s29, 0
      %p334 = por %p332, %p333
      %p335 = scmp.le.s32.totalorder 1, %s23
      %p336 = scmp.lt.s32.totalorder %s23, 3
      %p337 = pnand %p335, %p336
      %p338 = pneg %p337
      // Predicated region
      $region9: #{tpu_custom_call.1} parent=5 // pred_check
        _
      $region10: #{tpu_custom_call.1} parent=5 // pred_check_branch
        %340 = sbr.rel (%p337) target = $region12
      $region11: #{tpu_custom_call.1} parent=5 // pred_region
        %s341 = ssub.s32 %s23, 1
        // Predicated region
        $region13: #{tpu_custom_call.1} parent=11 // pred_check
          %p342 = pneg %p70
        $region14: #{tpu_custom_call.1} parent=11 // pred_check_branch
          %344 = sbr.rel (%p342) target = $region16
        $region15: #{tpu_custom_call.1} parent=11 // pred_region
          _
        $region16: #{tpu_custom_call.1} parent=11 // pred_fallthru
          _
        // Predicated region
        $region17: #{tpu_custom_call.1} parent=11 // pred_check
          %p345 = pneg %p91
        $region18: #{tpu_custom_call.1} parent=11 // pred_check_branch
          %347 = sbr.rel (%p345) target = $region20
        $region19: #{tpu_custom_call.1} parent=11 // pred_region
          _
        $region20: #{tpu_custom_call.1} parent=11 // pred_fallthru
          _
        // Predicated region
        $region21: #{tpu_custom_call.1} parent=11 // pred_check
          %p348 = pneg %p112
        $region22: #{tpu_custom_call.1} parent=11 // pred_check_branch
          %350 = sbr.rel (%p348) target = $region24
        $region23: #{tpu_custom_call.1} parent=11 // pred_region
          _
        $region24: #{tpu_custom_call.1} parent=11 // pred_fallthru
          _
        // Predicated region
        $region25: #{tpu_custom_call.1} parent=11 // pred_check
          %p351 = pneg %p133
        $region26: #{tpu_custom_call.1} parent=11 // pred_check_branch
          %353 = sbr.rel (%p351) target = $region28
        $region27: #{tpu_custom_call.1} parent=11 // pred_region
          _
        $region28: #{tpu_custom_call.1} parent=11 // pred_fallthru
          _
        // Predicated region
        $region29: #{tpu_custom_call.1} parent=11 // pred_check
          %p354 = pneg %p154
        $region30: #{tpu_custom_call.1} parent=11 // pred_check_branch
          %356 = sbr.rel (%p354) target = $region32
        $region31: #{tpu_custom_call.1} parent=11 // pred_region
          _
        $region32: #{tpu_custom_call.1} parent=11 // pred_fallthru
          _
        // Predicated region
        $region33: #{tpu_custom_call.1} parent=11 // pred_check
          %p357 = pneg %p175
        $region34: #{tpu_custom_call.1} parent=11 // pred_check_branch
          %359 = sbr.rel (%p357) target = $region36
        $region35: #{tpu_custom_call.1} parent=11 // pred_region
          _
        $region36: #{tpu_custom_call.1} parent=11 // pred_fallthru
          _
        // Predicated region
        $region37: #{tpu_custom_call.1} parent=11 // pred_check
          %p360 = pneg %p196
        $region38: #{tpu_custom_call.1} parent=11 // pred_check_branch
          %362 = sbr.rel (%p360) target = $region40
        $region39: #{tpu_custom_call.1} parent=11 // pred_region
          %s364 = ssub.s32 256, 256
          %365 = vsyncadd [#allocation3], %s364
          %s366 = sshll.u32 [#allocation2], 4
          %s367 = int_to_ptr.vmem [resolvable:$true] %s366
          %372 = dma.hbm_to_vmem [thread:$0]  %s7, 256, %s367, [#allocation3], 64, 64, 4
        $region40: #{tpu_custom_call.1} parent=11 // pred_fallthru
          _
        // Predicated region
        $region41: #{tpu_custom_call.1} parent=11 // pred_check
          %p373 = pneg %p217
        $region42: #{tpu_custom_call.1} parent=11 // pred_check_branch
          %375 = sbr.rel (%p373) target = $region44
        $region43: #{tpu_custom_call.1} parent=11 // pred_region
          _
        $region44: #{tpu_custom_call.1} parent=11 // pred_fallthru
          _
        // Predicated region
        $region45: #{tpu_custom_call.1} parent=11 // pred_check
          %p376 = pneg %p238
        $region46: #{tpu_custom_call.1} parent=11 // pred_check_branch
          %378 = sbr.rel (%p376) target = $region48
        $region47: #{tpu_custom_call.1} parent=11 // pred_region
          _
        $region48: #{tpu_custom_call.1} parent=11 // pred_fallthru
          _
        // Predicated region
        $region49: #{tpu_custom_call.1} parent=11 // pred_check
          %p379 = pneg %p259
        $region50: #{tpu_custom_call.1} parent=11 // pred_check_branch
          %381 = sbr.rel (%p379) target = $region52
        $region51: #{tpu_custom_call.1} parent=11 // pred_region
          _
        $region52: #{tpu_custom_call.1} parent=11 // pred_fallthru
          _
        // Predicated region
        $region53: #{tpu_custom_call.1} parent=11 // pred_check
          %p382 = pneg %p280
        $region54: #{tpu_custom_call.1} parent=11 // pred_check_branch
          %384 = sbr.rel (%p382) target = $region56
        $region55: #{tpu_custom_call.1} parent=11 // pred_region
          _
        $region56: #{tpu_custom_call.1} parent=11 // pred_fallthru
          _
        // Predicated region
        $region57: #{tpu_custom_call.1} parent=11 // pred_check
          %p385 = pneg %p301
        $region58: #{tpu_custom_call.1} parent=11 // pred_check_branch
          %387 = sbr.rel (%p385) target = $region60
        $region59: #{tpu_custom_call.1} parent=11 // pred_region
          _
        $region60: #{tpu_custom_call.1} parent=11 // pred_fallthru
          _
      $region12: #{tpu_custom_call.1} parent=5 // pred_fallthru
        _
      %p388 = scmp.lt.s32.totalorder %s23, 2
      // Predicated region
      $region61: #{tpu_custom_call.1} parent=5 // pred_check
        %p389 = pneg %p388
      $region62: #{tpu_custom_call.1} parent=5 // pred_check_branch
        %391 = sbr.rel (%p389) target = $region64
      $region63: #{tpu_custom_call.1} parent=5 // pred_region
        // Predicated region
        $region65: #{tpu_custom_call.1} parent=63 // pred_check
          %p392 = pneg %p43
        $region66: #{tpu_custom_call.1} parent=63 // pred_check_branch
          %394 = sbr.rel (%p392) target = $region68
        $region67: #{tpu_custom_call.1} parent=63 // pred_region
          %p395 = scmp.lt.s32.totalorder %s23, 1
          %s396 = scalar_select %p395, %s23, 1
          %s397 = smul.addr %s396, 8
          %s398 = scalar_lea.vmem %s0, %s397
        $region68: #{tpu_custom_call.1} parent=63 // pred_fallthru
          _
      $region64: #{tpu_custom_call.1} parent=5 // pred_fallthru
        _
      %p399 = scmp.le.s32.totalorder 1, %s23
      %p400 = scmp.lt.s32.totalorder %s23, 3
      %p401 = pnand %p399, %p400
      %p402 = pneg %p401
      // Predicated region
      $region69: #{tpu_custom_call.1} parent=5 // pred_check
        _
      $region70: #{tpu_custom_call.1} parent=5 // pred_check_branch
        %404 = sbr.rel (%p401) target = $region72
      $region71: #{tpu_custom_call.1} parent=5 // pred_region
        %s405 = ssub.s32 %s23, 1
        // Predicated region
        $region73: #{tpu_custom_call.1} parent=71 // pred_check
          %p406 = pneg %p196
        $region74: #{tpu_custom_call.1} parent=71 // pred_check_branch
          %408 = sbr.rel (%p406) target = $region76
        $region75: #{tpu_custom_call.1} parent=71 // pred_region
          %409 = dma.done [#allocation3], 256
        $region76: #{tpu_custom_call.1} parent=71 // pred_fallthru
          _
        %p410 = scmp.lt.s32.totalorder %s28, 1
        %s411 = scalar_select %p410, %s28, 1
        %s412 = smul.addr %s411, 8
        %s413 = scalar_lea.vmem %s0, %s412
        %p414 = pneg %p49
        %p415 = pneg %p46
        %p416 = pneg %p70
        %p417 = pneg %p67
        %p418 = pneg %p91
        %p419 = pneg %p88
        %p420 = pneg %p112
        %p421 = pneg %p109
        %p422 = pneg %p133
        %p423 = pneg %p130
        %p424 = pneg %p154
        %p425 = pneg %p151
        %p426 = pneg %p175
        %p427 = pneg %p172
        %p428 = pneg %p196
        %p429 = pneg %p193
        %p430 = pneg %p217
        %p431 = pneg %p214
        %p432 = pneg %p238
        %p433 = pneg %p235
        %p434 = pneg %p259
        %p435 = pneg %p256
        %p436 = pneg %p280
        %p437 = pneg %p277
        %p438 = pneg %p301
        %p439 = pneg %p298
        %p440 = pneg %p327
        %p441 = pneg %p324
        %s442 = sand.u32 %s314, 1
        %s443 = scalar_lea.sflag [#allocation4], %s442
        %s444 = sand.u32 %s314, 1
        %s445 = smul.addr %s444, 8
        %s446 = scalar_lea.vmem [#allocation5], %s445
        %p447 = scmp.lt.s32.totalorder %s28, 1
        %s448 = scalar_select %p447, %s28, 1
        %s449 = smul.addr %s448, 8
        %s450 = scalar_lea.vmem %s0, %s449
        %v452 = vld [vmem:[%s450] sm:$0xff]
        %v453 = vpack.c.bf16 %v452, %v452
        %v454 = vld [vmem:[%s1] sm:$0xf]
        %v455 = vld [vmem:[%s1 + $0x4] sm:$0xf]
        %v456 = vld [vmem:[%s1 + $0x8] sm:$0xf]
        %v457 = vld [vmem:[%s1 + $0xc] sm:$0xf]
        %v458 = vld [vmem:[%s2] sm:$0x1]
        %v460 = vlaneseq
        %v461 = vshrl.u32 %v460, 7
        %v462 = vsub.s32 0, %v461
        %v463 = vrot.slane %v458, %v462
        %v469 = vunpack.c.l.b16 %v454
        %v470 = vunpack.c.l.b16 %v455
        %v471 = vunpack.c.l.b16 %v456
        %v472 = vunpack.c.l.b16 %v457
        %v473 = vpack.c.b16 %v470, %v469
        %v474 = vpack.c.b16 %v472, %v471
        %vm477 = vcmask 261120
        %v479 = vsel %vm477, %v453, 0
        %481 = vmatprep.subr.bf16.mxu0 0
        %482 = vmatpush1.bf16.msra.mxu0 %v473
        %483 = vmatprep.subr.bf16.mxu0 0
        %484 = vmatpush1.bf16.msra.mxu0 %v474
        %485 = vmatprep.subr.bf16.mxu0 0
        %486 = vmatpush1.bf16.msra.mxu0 0
        %487 = vmatprep.subr.bf16.mxu0 0
        %488 = vmatpush1.bf16.msra.mxu0 0
        %489 = vmatprep.subr.bf16.mxu0 0
        %490 = vmatpush1.bf16.msra.mxu0 0
        %491 = vmatprep.subr.bf16.mxu0 0
        %492 = vmatpush1.bf16.msra.mxu0 0
        %493 = vmatprep.subr.bf16.mxu0 0
        %494 = vmatpush1.bf16.msra.mxu0 0
        %495 = vmatprep.subr.bf16.mxu0 0
        %496 = vmatpush1.bf16.msra.mxu0 0
        %497 = vmatprep.subr.bf16.mxu0 0
        %498 = vmatpush1.bf16.msra.mxu0 0
        %499 = vmatprep.subr.bf16.mxu0 0
        %500 = vmatpush1.bf16.msra.mxu0 0
        %501 = vmatprep.subr.bf16.mxu0 0
        %502 = vmatpush1.bf16.msra.mxu0 0
        %503 = vmatprep.subr.bf16.mxu0 0
        %504 = vmatpush1.bf16.msra.mxu0 0
        %505 = vmatprep.subr.bf16.mxu0 0
        %506 = vmatpush1.bf16.msra.mxu0 0
        %507 = vmatprep.subr.bf16.mxu0 0
        %508 = vmatpush1.bf16.msra.mxu0 0
        %509 = vmatprep.subr.bf16.mxu0 0
        %510 = vmatpush1.bf16.msra.mxu0 0
        %511 = vmatprep.subr.bf16.mxu0 0
        %512 = vmatpush1.bf16.msra.mxu0 0
        %513 = vmatprep.mubr.bf16.mxu0 0
        %514 = vmatmul.mubr.bf16.gmra.mrb[0].mxu0 %v479
        %v515 = vpop.f32.mrb[0].mxu0
        %v516 = vadd.f32 %v463, %v515
        %v517 = vpop.f32.mrb[0].mxu0
        %v518 = vpop.f32.mrb[0].mxu0
        %v519 = vpop.f32.mrb[0].mxu0
        %520 = vdwg.mxu0
        %522 = vrot.lane.b32.xlu0 %v516, 120
        %v523 = vpop.permute.xlu0 %522
        %525 = vrot.lane.b32.xlu0 %v516, 112
        %v526 = vpop.permute.xlu0 %525
        %528 = vrot.lane.b32.xlu0 %v516, 104
        %v529 = vpop.permute.xlu0 %528
        %v531 = vpack.c.bf16 %v516, %v516
        %v532 = vpack.c.bf16 %v523, %v523
        %v533 = vpack.c.bf16 %v526, %v526
        %v534 = vpack.c.bf16 %v529, %v529
        %536 = vrot.lane.b32.xlu0 %v531, 96
        %v537 = vpop.permute.xlu0 %536
        %vm538 = vcmask 64512
        %v540 = vsel %vm538, %v531, 0
        %v543 = vsel %vm538, %v537, 0
        %545 = vmatprep.subr.bf16.mxu0 0
        %546 = vmatpush1.bf16.xpose.msra.mxu0 %v543
        %547 = vmatprep.subr.bf16.mxu0 0
        %548 = vmatpush1.bf16.xpose.msra.mxu0 0
        %549 = vmatprep.subr.bf16.mxu0 0
        %550 = vmatpush1.bf16.xpose.msra.mxu0 0
        %551 = vmatprep.subr.bf16.mxu0 0
        %552 = vmatpush1.bf16.xpose.msra.mxu0 0
        %553 = vmatprep.subr.bf16.mxu0 0
        %554 = vmatpush1.bf16.xpose.msra.mxu0 0
        %555 = vmatprep.subr.bf16.mxu0 0
        %556 = vmatpush1.bf16.xpose.msra.mxu0 0
        %557 = vmatprep.subr.bf16.mxu0 0
        %558 = vmatpush1.bf16.xpose.msra.mxu0 0
        %559 = vmatprep.subr.bf16.mxu0 0
        %560 = vmatpush1.bf16.xpose.msra.mxu0 0
        %561 = vmatprep.subr.bf16.mxu0 0
        %562 = vmatpush1.bf16.xpose.msra.mxu0 0
        %563 = vmatprep.subr.bf16.mxu0 0
        %564 = vmatpush1.bf16.xpose.msra.mxu0 0
        %565 = vmatprep.subr.bf16.mxu0 0
        %566 = vmatpush1.bf16.xpose.msra.mxu0 0
        %567 = vmatprep.subr.bf16.mxu0 0
        %568 = vmatpush1.bf16.xpose.msra.mxu0 0
        %569 = vmatprep.subr.bf16.mxu0 0
        %570 = vmatpush1.bf16.xpose.msra.mxu0 0
        %571 = vmatprep.subr.bf16.mxu0 0
        %572 = vmatpush1.bf16.xpose.msra.mxu0 0
        %573 = vmatprep.subr.bf16.mxu0 0
        %574 = vmatpush1.bf16.xpose.msra.mxu0 0
        %575 = vmatprep.subr.bf16.mxu0 0
        %576 = vmatpush1.bf16.xpose.msra.mxu0 0
        %577 = vmatprep.mubr.bf16.mxu0 0
        %578 = vmatmul.mubr.bf16.gmra.mrb[0].mxu0 %v540
        %v579 = vpop.f32.mrb[0].mxu0
        %v580 = vadd.f32 0.0, %v579
        %v581 = vpop.f32.mrb[0].mxu0
        %v582 = vpop.f32.mrb[0].mxu0
        %v583 = vpop.f32.mrb[0].mxu0
        %584 = vdwg.mxu0
        %586 = vrot.lane.b32.xlu0 %v532, 96
        %v587 = vpop.permute.xlu0 %586
        %v589 = vsel %vm538, %v532, 0
        %v592 = vsel %vm538, %v587, 0
        %594 = vmatprep.subr.bf16.mxu0 0
        %595 = vmatpush1.bf16.xpose.msra.mxu0 %v592
        %596 = vmatprep.subr.bf16.mxu0 0
        %597 = vmatpush1.bf16.xpose.msra.mxu0 0
        %598 = vmatprep.subr.bf16.mxu0 0
        %599 = vmatpush1.bf16.xpose.msra.mxu0 0
        %600 = vmatprep.subr.bf16.mxu0 0
        %601 = vmatpush1.bf16.xpose.msra.mxu0 0
        %602 = vmatprep.subr.bf16.mxu0 0
        %603 = vmatpush1.bf16.xpose.msra.mxu0 0
        %604 = vmatprep.subr.bf16.mxu0 0
        %605 = vmatpush1.bf16.xpose.msra.mxu0 0
        %606 = vmatprep.subr.bf16.mxu0 0
        %607 = vmatpush1.bf16.xpose.msra.mxu0 0
        %608 = vmatprep.subr.bf16.mxu0 0
        %609 = vmatpush1.bf16.xpose.msra.mxu0 0
        %610 = vmatprep.subr.bf16.mxu0 0
        %611 = vmatpush1.bf16.xpose.msra.mxu0 0
        %612 = vmatprep.subr.bf16.mxu0 0
        %613 = vmatpush1.bf16.xpose.msra.mxu0 0
        %614 = vmatprep.subr.bf16.mxu0 0
        %615 = vmatpush1.bf16.xpose.msra.mxu0 0
        %616 = vmatprep.subr.bf16.mxu0 0
        %617 = vmatpush1.bf16.xpose.msra.mxu0 0
        %618 = vmatprep.subr.bf16.mxu0 0
        %619 = vmatpush1.bf16.xpose.msra.mxu0 0
        %620 = vmatprep.subr.bf16.mxu0 0
        %621 = vmatpush1.bf16.xpose.msra.mxu0 0
        %622 = vmatprep.subr.bf16.mxu0 0
        %623 = vmatpush1.bf16.xpose.msra.mxu0 0
        %624 = vmatprep.subr.bf16.mxu0 0
        %625 = vmatpush1.bf16.xpose.msra.mxu0 0
        %626 = vmatprep.mubr.bf16.mxu0 0
        %627 = vmatmul.mubr.bf16.gmra.mrb[0].mxu0 %v589
        %v628 = vpop.f32.mrb[0].mxu0
        %v629 = vadd.f32 0.0, %v628
        %v630 = vpop.f32.mrb[0].mxu0
        %v631 = vpop.f32.mrb[0].mxu0
        %v632 = vpop.f32.mrb[0].mxu0
        %633 = vdwg.mxu0
        %635 = vrot.lane.b32.xlu0 %v533, 96
        %v636 = vpop.permute.xlu0 %635
        %v638 = vsel %vm538, %v533, 0
        %v641 = vsel %vm538, %v636, 0
        %643 = vmatprep.subr.bf16.mxu0 0
        %644 = vmatpush1.bf16.xpose.msra.mxu0 %v641
        %645 = vmatprep.subr.bf16.mxu0 0
        %646 = vmatpush1.bf16.xpose.msra.mxu0 0
        %647 = vmatprep.subr.bf16.mxu0 0
        %648 = vmatpush1.bf16.xpose.msra.mxu0 0
        %649 = vmatprep.subr.bf16.mxu0 0
        %650 = vmatpush1.bf16.xpose.msra.mxu0 0
        %651 = vmatprep.subr.bf16.mxu0 0
        %652 = vmatpush1.bf16.xpose.msra.mxu0 0
        %653 = vmatprep.subr.bf16.mxu0 0
        %654 = vmatpush1.bf16.xpose.msra.mxu0 0
        %655 = vmatprep.subr.bf16.mxu0 0
        %656 = vmatpush1.bf16.xpose.msra.mxu0 0
        %657 = vmatprep.subr.bf16.mxu0 0
        %658 = vmatpush1.bf16.xpose.msra.mxu0 0
        %659 = vmatprep.subr.bf16.mxu0 0
        %660 = vmatpush1.bf16.xpose.msra.mxu0 0
        %661 = vmatprep.subr.bf16.mxu0 0
        %662 = vmatpush1.bf16.xpose.msra.mxu0 0
        %663 = vmatprep.subr.bf16.mxu0 0
        %664 = vmatpush1.bf16.xpose.msra.mxu0 0
        %665 = vmatprep.subr.bf16.mxu0 0
        %666 = vmatpush1.bf16.xpose.msra.mxu0 0
        %667 = vmatprep.subr.bf16.mxu0 0
        %668 = vmatpush1.bf16.xpose.msra.mxu0 0
        %669 = vmatprep.subr.bf16.mxu0 0
        %670 = vmatpush1.bf16.xpose.msra.mxu0 0
        %671 = vmatprep.subr.bf16.mxu0 0
        %672 = vmatpush1.bf16.xpose.msra.mxu0 0
        %673 = vmatprep.subr.bf16.mxu0 0
        %674 = vmatpush1.bf16.xpose.msra.mxu0 0
        %675 = vmatprep.mubr.bf16.mxu0 0
        %676 = vmatmul.mubr.bf16.gmra.mrb[0].mxu0 %v638
        %v677 = vpop.f32.mrb[0].mxu0
        %v678 = vadd.f32 0.0, %v677
        %v679 = vpop.f32.mrb[0].mxu0
        %v680 = vpop.f32.mrb[0].mxu0
        %v681 = vpop.f32.mrb[0].mxu0
        %682 = vdwg.mxu0
        %684 = vrot.lane.b32.xlu0 %v534, 96
        %v685 = vpop.permute.xlu0 %684
        %v687 = vsel %vm538, %v534, 0
        %v690 = vsel %vm538, %v685, 0
        %692 = vmatprep.subr.bf16.mxu0 0
        %693 = vmatpush1.bf16.xpose.msra.mxu0 %v690
        %694 = vmatprep.subr.bf16.mxu0 0
        %695 = vmatpush1.bf16.xpose.msra.mxu0 0
        %696 = vmatprep.subr.bf16.mxu0 0
        %697 = vmatpush1.bf16.xpose.msra.mxu0 0
        %698 = vmatprep.subr.bf16.mxu0 0
        %699 = vmatpush1.bf16.xpose.msra.mxu0 0
        %700 = vmatprep.subr.bf16.mxu0 0
        %701 = vmatpush1.bf16.xpose.msra.mxu0 0
        %702 = vmatprep.subr.bf16.mxu0 0
        %703 = vmatpush1.bf16.xpose.msra.mxu0 0
        %704 = vmatprep.subr.bf16.mxu0 0
        %705 = vmatpush1.bf16.xpose.msra.mxu0 0
        %706 = vmatprep.subr.bf16.mxu0 0
        %707 = vmatpush1.bf16.xpose.msra.mxu0 0
        %708 = vmatprep.subr.bf16.mxu0 0
        %709 = vmatpush1.bf16.xpose.msra.mxu0 0
        %710 = vmatprep.subr.bf16.mxu0 0
        %711 = vmatpush1.bf16.xpose.msra.mxu0 0
        %712 = vmatprep.subr.bf16.mxu0 0
        %713 = vmatpush1.bf16.xpose.msra.mxu0 0
        %714 = vmatprep.subr.bf16.mxu0 0
        %715 = vmatpush1.bf16.xpose.msra.mxu0 0
        %716 = vmatprep.subr.bf16.mxu0 0
        %717 = vmatpush1.bf16.xpose.msra.mxu0 0
        %718 = vmatprep.subr.bf16.mxu0 0
        %719 = vmatpush1.bf16.xpose.msra.mxu0 0
        %720 = vmatprep.subr.bf16.mxu0 0
        %721 = vmatpush1.bf16.xpose.msra.mxu0 0
        %722 = vmatprep.subr.bf16.mxu0 0
        %723 = vmatpush1.bf16.xpose.msra.mxu0 0
        %724 = vmatprep.mubr.bf16.mxu0 0
        %725 = vmatmul.mubr.bf16.gmra.mrb[0].mxu0 %v687
        %v726 = vpop.f32.mrb[0].mxu0
        %v727 = vadd.f32 0.0, %v726
        %v728 = vpop.f32.mrb[0].mxu0
        %v729 = vpop.f32.mrb[0].mxu0
        %v730 = vpop.f32.mrb[0].mxu0
        %731 = vdwg.mxu0
        %v732 = vsel %vm538, %v580, -inf
        %733 = vmax.xlane.f32.xlu0 %v732
        %v734 = vpop.xlane.xlu0 %733
        %v735 = vsel %vm538, %v629, -inf
        %736 = vmax.xlane.f32.xlu0 %v735
        %v737 = vpop.xlane.xlu0 %736
        %v738 = vsel %vm538, %v678, -inf
        %739 = vmax.xlane.f32.xlu0 %v738
        %v740 = vpop.xlane.xlu0 %739
        %v741 = vsel %vm538, %v727, -inf
        %742 = vmax.xlane.f32.xlu0 %v741
        %v743 = vpop.xlane.xlu0 %742
        %v744 = vsub.f32 %v580, %v734
        %v745 = vsub.f32 %v629, %v737
        %v746 = vsub.f32 %v678, %v740
        %v747 = vsub.f32 %v727, %v743
        %v748 = vmul.f32 %v744, 1.442695
        %v749 = vpow.pop %v748
        %v750 = vmul.f32 %v745, 1.442695
        %v751 = vpow.pop %v750
        %v752 = vmul.f32 %v746, 1.442695
        %v753 = vpow.pop %v752
        %v754 = vmul.f32 %v747, 1.442695
        %v755 = vpow.pop %v754
        %v756 = vsel %vm538, %v749, 0.0
        %757 = vadd.xlane.f32.xlu0 %v756
        %v758 = vpop.xlane.xlu0 %757
        %v759 = vsel %vm538, %v751, 0.0
        %760 = vadd.xlane.f32.xlu0 %v759
        %v761 = vpop.xlane.xlu0 %760
        %v762 = vsel %vm538, %v753, 0.0
        %763 = vadd.xlane.f32.xlu0 %v762
        %v764 = vpop.xlane.xlu0 %763
        %v765 = vsel %vm538, %v755, 0.0
        %766 = vadd.xlane.f32.xlu0 %v765
        %v767 = vpop.xlane.xlu0 %766
        %v768 = vrcp.pop %v758
        %v769 = vrcp.pop %v761
        %v770 = vrcp.pop %v764
        %v771 = vrcp.pop %v767
        %v772 = vmul.f32 %v749, %v768
        %v773 = vmul.f32 %v751, %v769
        %v774 = vmul.f32 %v753, %v770
        %v775 = vmul.f32 %v755, %v771
        %v776 = vpack.c.bf16 %v772, %v772
        %v777 = vpack.c.bf16 %v773, %v773
        %v778 = vpack.c.bf16 %v774, %v774
        %v779 = vpack.c.bf16 %v775, %v775
        %780 = vrot.lane.b32.xlu0 %v531, 64
        %v781 = vpop.permute.xlu0 %780
        %v783 = vsel %vm538, %v776, 0
        %vm785 = vcmask 1043456
        %v787 = vsel %vm785, %v781, 0
        %789 = vmatprep.subr.bf16.mxu0 0
        %790 = vmatpush1.bf16.msra.mxu0 %v787
        %791 = vmatprep.subr.bf16.mxu0 0
        %792 = vmatpush1.bf16.msra.mxu0 0
        %793 = vmatprep.subr.bf16.mxu0 0
        %794 = vmatpush1.bf16.msra.mxu0 0
        %795 = vmatprep.subr.bf16.mxu0 0
        %796 = vmatpush1.bf16.msra.mxu0 0
        %797 = vmatprep.subr.bf16.mxu0 0
        %798 = vmatpush1.bf16.msra.mxu0 0
        %799 = vmatprep.subr.bf16.mxu0 0
        %800 = vmatpush1.bf16.msra.mxu0 0
        %801 = vmatprep.subr.bf16.mxu0 0
        %802 = vmatpush1.bf16.msra.mxu0 0
        %803 = vmatprep.subr.bf16.mxu0 0
        %804 = vmatpush1.bf16.msra.mxu0 0
        %805 = vmatprep.subr.bf16.mxu0 0
        %806 = vmatpush1.bf16.msra.mxu0 0
        %807 = vmatprep.subr.bf16.mxu0 0
        %808 = vmatpush1.bf16.msra.mxu0 0
        %809 = vmatprep.subr.bf16.mxu0 0
        %810 = vmatpush1.bf16.msra.mxu0 0
        %811 = vmatprep.subr.bf16.mxu0 0
        %812 = vmatpush1.bf16.msra.mxu0 0
        %813 = vmatprep.subr.bf16.mxu0 0
        %814 = vmatpush1.bf16.msra.mxu0 0
        %815 = vmatprep.subr.bf16.mxu0 0
        %816 = vmatpush1.bf16.msra.mxu0 0
        %817 = vmatprep.subr.bf16.mxu0 0
        %818 = vmatpush1.bf16.msra.mxu0 0
        %819 = vmatprep.subr.bf16.mxu0 0
        %820 = vmatpush1.bf16.msra.mxu0 0
        %821 = vmatprep.mubr.bf16.mxu0 0
        %822 = vmatmul.mubr.bf16.gmra.mrb[0].mxu0 %v783
        %v823 = vpop.f32.mrb[0].mxu0
        %v824 = vadd.f32 0.0, %v823
        %v825 = vpop.f32.mrb[0].mxu0
        %v826 = vpop.f32.mrb[0].mxu0
        %v827 = vpop.f32.mrb[0].mxu0
        %828 = vdwg.mxu0
        %829 = vrot.lane.b32.xlu0 %v532, 64
        %v830 = vpop.permute.xlu0 %829
        %v832 = vsel %vm538, %v777, 0
        %v835 = vsel %vm785, %v830, 0
        %837 = vmatprep.subr.bf16.mxu0 0
        %838 = vmatpush1.bf16.msra.mxu0 %v835
        %839 = vmatprep.subr.bf16.mxu0 0
        %840 = vmatpush1.bf16.msra.mxu0 0
        %841 = vmatprep.subr.bf16.mxu0 0
        %842 = vmatpush1.bf16.msra.mxu0 0
        %843 = vmatprep.subr.bf16.mxu0 0
        %844 = vmatpush1.bf16.msra.mxu0 0
        %845 = vmatprep.subr.bf16.mxu0 0
        %846 = vmatpush1.bf16.msra.mxu0 0
        %847 = vmatprep.subr.bf16.mxu0 0
        %848 = vmatpush1.bf16.msra.mxu0 0
        %849 = vmatprep.subr.bf16.mxu0 0
        %850 = vmatpush1.bf16.msra.mxu0 0
        %851 = vmatprep.subr.bf16.mxu0 0
        %852 = vmatpush1.bf16.msra.mxu0 0
        %853 = vmatprep.subr.bf16.mxu0 0
        %854 = vmatpush1.bf16.msra.mxu0 0
        %855 = vmatprep.subr.bf16.mxu0 0
        %856 = vmatpush1.bf16.msra.mxu0 0
        %857 = vmatprep.subr.bf16.mxu0 0
        %858 = vmatpush1.bf16.msra.mxu0 0
        %859 = vmatprep.subr.bf16.mxu0 0
        %860 = vmatpush1.bf16.msra.mxu0 0
        %861 = vmatprep.subr.bf16.mxu0 0
        %862 = vmatpush1.bf16.msra.mxu0 0
        %863 = vmatprep.subr.bf16.mxu0 0
        %864 = vmatpush1.bf16.msra.mxu0 0
        %865 = vmatprep.subr.bf16.mxu0 0
        %866 = vmatpush1.bf16.msra.mxu0 0
        %867 = vmatprep.subr.bf16.mxu0 0
        %868 = vmatpush1.bf16.msra.mxu0 0
        %869 = vmatprep.mubr.bf16.mxu0 0
        %870 = vmatmul.mubr.bf16.gmra.mrb[0].mxu0 %v832
        %v871 = vpop.f32.mrb[0].mxu0
        %v872 = vadd.f32 0.0, %v871
        %v873 = vpop.f32.mrb[0].mxu0
        %v874 = vpop.f32.mrb[0].mxu0
        %v875 = vpop.f32.mrb[0].mxu0
        %876 = vdwg.mxu0
        %877 = vrot.lane.b32.xlu0 %v533, 64
        %v878 = vpop.permute.xlu0 %877
        %v880 = vsel %vm538, %v778, 0
        %v883 = vsel %vm785, %v878, 0
        %885 = vmatprep.subr.bf16.mxu0 0
        %886 = vmatpush1.bf16.msra.mxu0 %v883
        %887 = vmatprep.subr.bf16.mxu0 0
        %888 = vmatpush1.bf16.msra.mxu0 0
        %889 = vmatprep.subr.bf16.mxu0 0
        %890 = vmatpush1.bf16.msra.mxu0 0
        %891 = vmatprep.subr.bf16.mxu0 0
        %892 = vmatpush1.bf16.msra.mxu0 0
        %893 = vmatprep.subr.bf16.mxu0 0
        %894 = vmatpush1.bf16.msra.mxu0 0
        %895 = vmatprep.subr.bf16.mxu0 0
        %896 = vmatpush1.bf16.msra.mxu0 0
        %897 = vmatprep.subr.bf16.mxu0 0
        %898 = vmatpush1.bf16.msra.mxu0 0
        %899 = vmatprep.subr.bf16.mxu0 0
        %900 = vmatpush1.bf16.msra.mxu0 0
        %901 = vmatprep.subr.bf16.mxu0 0
        %902 = vmatpush1.bf16.msra.mxu0 0
        %903 = vmatprep.subr.bf16.mxu0 0
        %904 = vmatpush1.bf16.msra.mxu0 0
        %905 = vmatprep.subr.bf16.mxu0 0
        %906 = vmatpush1.bf16.msra.mxu0 0
        %907 = vmatprep.subr.bf16.mxu0 0
        %908 = vmatpush1.bf16.msra.mxu0 0
        %909 = vmatprep.subr.bf16.mxu0 0
        %910 = vmatpush1.bf16.msra.mxu0 0
        %911 = vmatprep.subr.bf16.mxu0 0
        %912 = vmatpush1.bf16.msra.mxu0 0
        %913 = vmatprep.subr.bf16.mxu0 0
        %914 = vmatpush1.bf16.msra.mxu0 0
        %915 = vmatprep.subr.bf16.mxu0 0
        %916 = vmatpush1.bf16.msra.mxu0 0
        %917 = vmatprep.mubr.bf16.mxu0 0
        %918 = vmatmul.mubr.bf16.gmra.mrb[0].mxu0 %v880
        %v919 = vpop.f32.mrb[0].mxu0
        %v920 = vadd.f32 0.0, %v919
        %v921 = vpop.f32.mrb[0].mxu0
        %v922 = vpop.f32.mrb[0].mxu0
        %v923 = vpop.f32.mrb[0].mxu0
        %924 = vdwg.mxu0
        %925 = vrot.lane.b32.xlu0 %v534, 64
        %v926 = vpop.permute.xlu0 %925
        %v928 = vsel %vm538, %v779, 0
        %v931 = vsel %vm785, %v926, 0
        %933 = vmatprep.subr.bf16.mxu0 0
        %934 = vmatpush1.bf16.msra.mxu0 %v931
        %935 = vmatprep.subr.bf16.mxu0 0
        %936 = vmatpush1.bf16.msra.mxu0 0
        %937 = vmatprep.subr.bf16.mxu0 0
        %938 = vmatpush1.bf16.msra.mxu0 0
        %939 = vmatprep.subr.bf16.mxu0 0
        %940 = vmatpush1.bf16.msra.mxu0 0
        %941 = vmatprep.subr.bf16.mxu0 0
        %942 = vmatpush1.bf16.msra.mxu0 0
        %943 = vmatprep.subr.bf16.mxu0 0
        %944 = vmatpush1.bf16.msra.mxu0 0
        %945 = vmatprep.subr.bf16.mxu0 0
        %946 = vmatpush1.bf16.msra.mxu0 0
        %947 = vmatprep.subr.bf16.mxu0 0
        %948 = vmatpush1.bf16.msra.mxu0 0
        %949 = vmatprep.subr.bf16.mxu0 0
        %950 = vmatpush1.bf16.msra.mxu0 0
        %951 = vmatprep.subr.bf16.mxu0 0
        %952 = vmatpush1.bf16.msra.mxu0 0
        %953 = vmatprep.subr.bf16.mxu0 0
        %954 = vmatpush1.bf16.msra.mxu0 0
        %955 = vmatprep.subr.bf16.mxu0 0
        %956 = vmatpush1.bf16.msra.mxu0 0
        %957 = vmatprep.subr.bf16.mxu0 0
        %958 = vmatpush1.bf16.msra.mxu0 0
        %959 = vmatprep.subr.bf16.mxu0 0
        %960 = vmatpush1.bf16.msra.mxu0 0
        %961 = vmatprep.subr.bf16.mxu0 0
        %962 = vmatpush1.bf16.msra.mxu0 0
        %963 = vmatprep.subr.bf16.mxu0 0
        %964 = vmatpush1.bf16.msra.mxu0 0
        %965 = vmatprep.mubr.bf16.mxu0 0
        %966 = vmatmul.mubr.bf16.gmra.mrb[0].mxu0 %v928
        %v967 = vpop.f32.mrb[0].mxu0
        %v968 = vadd.f32 0.0, %v967
        %v969 = vpop.f32.mrb[0].mxu0
        %v970 = vpop.f32.mrb[0].mxu0
        %v971 = vpop.f32.mrb[0].mxu0
        %972 = vdwg.mxu0
        %974 = vrot.lane.b32.xlu0 %v872, 8
        %v975 = vpop.permute.xlu0 %974
        %978 = vrot.lane.b32.xlu0 %v920, 16
        %v979 = vpop.permute.xlu0 %978
        %982 = vrot.lane.b32.xlu0 %v968, 24
        %v983 = vpop.permute.xlu0 %982
        %v985 = vsel %vm538, %v824, %v975
        %vm986 = vcmask 130048
        %v987 = vsel %vm986, %v985, %v979
        %vm988 = vcmask 195584
        %v989 = vsel %vm988, %v987, %v983
        %v990 = vpack.c.bf16 %v989, %v989
        %v991 = vld [vmem:[%s3] sm:$0xf]
        %v992 = vld [vmem:[%s3 + $0x4] sm:$0xf]
        %v993 = vld [vmem:[%s3 + $0x8] sm:$0xf]
        %v994 = vld [vmem:[%s3 + $0xc] sm:$0xf]
        %v995 = vld [vmem:[%s4] sm:$0x1]
        %v997 = vlaneseq
        %v998 = vshrl.u32 %v997, 7
        %v999 = vsub.s32 0, %v998
        %v1000 = vrot.slane %v995, %v999
        %v1006 = vunpack.c.l.b16 %v991
        %v1007 = vunpack.c.l.b16 %v992
        %v1008 = vunpack.c.l.b16 %v993
        %v1009 = vunpack.c.l.b16 %v994
        %v1010 = vpack.c.b16 %v1007, %v1006
        %v1011 = vpack.c.b16 %v1009, %v1008
        %v1015 = vsel %vm477, %v990, 0
        %1017 = vmatprep.subr.bf16.mxu0 0
        %1018 = vmatpush1.bf16.msra.mxu0 %v1010
        %1019 = vmatprep.subr.bf16.mxu0 0
        %1020 = vmatpush1.bf16.msra.mxu0 %v1011
        %1021 = vmatprep.subr.bf16.mxu0 0
        %1022 = vmatpush1.bf16.msra.mxu0 0
        %1023 = vmatprep.subr.bf16.mxu0 0
        %1024 = vmatpush1.bf16.msra.mxu0 0
        %1025 = vmatprep.subr.bf16.mxu0 0
        %1026 = vmatpush1.bf16.msra.mxu0 0
        %1027 = vmatprep.subr.bf16.mxu0 0
        %1028 = vmatpush1.bf16.msra.mxu0 0
        %1029 = vmatprep.subr.bf16.mxu0 0
        %1030 = vmatpush1.bf16.msra.mxu0 0
        %1031 = vmatprep.subr.bf16.mxu0 0
        %1032 = vmatpush1.bf16.msra.mxu0 0
        %1033 = vmatprep.subr.bf16.mxu0 0
        %1034 = vmatpush1.bf16.msra.mxu0 0
        %1035 = vmatprep.subr.bf16.mxu0 0
        %1036 = vmatpush1.bf16.msra.mxu0 0
        %1037 = vmatprep.subr.bf16.mxu0 0
        %1038 = vmatpush1.bf16.msra.mxu0 0
        %1039 = vmatprep.subr.bf16.mxu0 0
        %1040 = vmatpush1.bf16.msra.mxu0 0
        %1041 = vmatprep.subr.bf16.mxu0 0
        %1042 = vmatpush1.bf16.msra.mxu0 0
        %1043 = vmatprep.subr.bf16.mxu0 0
        %1044 = vmatpush1.bf16.msra.mxu0 0
        %1045 = vmatprep.subr.bf16.mxu0 0
        %1046 = vmatpush1.bf16.msra.mxu0 0
        %1047 = vmatprep.subr.bf16.mxu0 0
        %1048 = vmatpush1.bf16.msra.mxu0 0
        %1049 = vmatprep.mubr.bf16.mxu0 0
        %1050 = vmatmul.mubr.bf16.gmra.mrb[0].mxu0 %v1015
        %v1051 = vpop.f32.mrb[0].mxu0
        %v1052 = vadd.f32 %v1000, %v1051
        %v1053 = vpop.f32.mrb[0].mxu0
        %v1054 = vpop.f32.mrb[0].mxu0
        %v1055 = vpop.f32.mrb[0].mxu0
        %1056 = vdwg.mxu0
        %v1057 = vadd.f32 %v1052, %v452
        %v1058 = vld [vmem:[%s5] sm:$0x1]
        %v1059 = vld [vmem:[%s6] sm:$0x1]
        %v1060 = vsel %vm477, %v1057, 0.0
        %1061 = vadd.xlane.f32.xlu0 %v1060
        %v1062 = vpop.xlane.xlu0 %1061
        %v1063 = vrcp.pop 32.0
        %v1064 = vmul.f32 %v1062, %v1063
        %v1065 = vsub.f32 %v1057, %v1064
        %v1066 = vmul.f32 %v1065, %v1065
        %v1067 = vsel %vm477, %v1066, 0.0
        %1068 = vadd.xlane.f32.xlu0 %v1067
        %v1069 = vpop.xlane.xlu0 %1068
        %v1070 = vmul.f32 %v1069, %v1063
        %v1071 = vadd.f32 %v1070, 1e-05
        %v1072 = vrsqrt.pop %v1071
        %v1073 = vmul.f32 %v1065, %v1072
        %v1075 = vlaneseq
        %v1076 = vshrl.u32 %v1075, 7
        %v1077 = vsub.s32 0, %v1076
        %v1078 = vrot.slane %v1058, %v1077
        %v1080 = vmul.f32 %v1073, %v1078
        %v1082 = vlaneseq
        %v1083 = vshrl.u32 %v1082, 7
        %v1084 = vsub.s32 0, %v1083
        %v1085 = vrot.slane %v1059, %v1084
        %v1087 = vadd.f32 %v1080, %v1085
        %v1088 = vpack.c.bf16 %v1087, %v1087
        %v1089 = vld [vmem:[#allocation2] sm:$0xf]
        %v1090 = vld [vmem:[#allocation2 + $0x4] sm:$0xf]
        %v1091 = vld [vmem:[#allocation2 + $0x8] sm:$0xf]
        %v1092 = vld [vmem:[#allocation2 + $0xc] sm:$0xf]
        %v1093 = vld [vmem:[%s8] sm:$0x1]
        %v1095 = vlaneseq
        %v1096 = vshrl.u32 %v1095, 7
        %v1097 = vsub.s32 0, %v1096
        %v1098 = vrot.slane %v1093, %v1097
        %v1104 = vunpack.c.l.b16 %v1089
        %v1105 = vunpack.c.l.b16 %v1090
        %v1106 = vunpack.c.l.b16 %v1091
        %v1107 = vunpack.c.l.b16 %v1092
        %v1108 = vpack.c.b16 %v1105, %v1104
        %v1109 = vpack.c.b16 %v1107, %v1106
        %v1113 = vsel %vm477, %v1088, 0
        %1115 = vmatprep.subr.bf16.mxu0 0
        %1116 = vmatpush1.bf16.msra.mxu0 %v1108
        %1117 = vmatprep.subr.bf16.mxu0 0
        %1118 = vmatpush1.bf16.msra.mxu0 %v1109
        %1119 = vmatprep.subr.bf16.mxu0 0
        %1120 = vmatpush1.bf16.msra.mxu0 0
        %1121 = vmatprep.subr.bf16.mxu0 0
        %1122 = vmatpush1.bf16.msra.mxu0 0
        %1123 = vmatprep.subr.bf16.mxu0 0
        %1124 = vmatpush1.bf16.msra.mxu0 0
        %1125 = vmatprep.subr.bf16.mxu0 0
        %1126 = vmatpush1.bf16.msra.mxu0 0
        %1127 = vmatprep.subr.bf16.mxu0 0
        %1128 = vmatpush1.bf16.msra.mxu0 0
        %1129 = vmatprep.subr.bf16.mxu0 0
        %1130 = vmatpush1.bf16.msra.mxu0 0
        %1131 = vmatprep.subr.bf16.mxu0 0
        %1132 = vmatpush1.bf16.msra.mxu0 0
        %1133 = vmatprep.subr.bf16.mxu0 0
        %1134 = vmatpush1.bf16.msra.mxu0 0
        %1135 = vmatprep.subr.bf16.mxu0 0
        %1136 = vmatpush1.bf16.msra.mxu0 0
        %1137 = vmatprep.subr.bf16.mxu0 0
        %1138 = vmatpush1.bf16.msra.mxu0 0
        %1139 = vmatprep.subr.bf16.mxu0 0
        %1140 = vmatpush1.bf16.msra.mxu0 0
        %1141 = vmatprep.subr.bf16.mxu0 0
        %1142 = vmatpush1.bf16.msra.mxu0 0
        %1143 = vmatprep.subr.bf16.mxu0 0
        %1144 = vmatpush1.bf16.msra.mxu0 0
        %1145 = vmatprep.subr.bf16.mxu0 0
        %1146 = vmatpush1.bf16.msra.mxu0 0
        %1147 = vmatprep.mubr.bf16.mxu0 0
        %1148 = vmatmul.mubr.bf16.gmra.mrb[0].mxu0 %v1113
        %v1149 = vpop.f32.mrb[0].mxu0
        %v1150 = vadd.f32 %v1098, %v1149
        %v1151 = vpop.f32.mrb[0].mxu0
        %v1152 = vpop.f32.mrb[0].mxu0
        %v1153 = vpop.f32.mrb[0].mxu0
        %1154 = vdwg.mxu0
        %v1155 = vmul.f32 %v1150, 0.5
        %v1156 = vmul.f32 %v1150, 0.70710677
        %v1157 = verf.f32.pop %v1156
        %v1158 = vadd.f32 %v1157, 1.0
        %v1159 = vmul.f32 %v1155, %v1158
        %v1160 = vpack.c.bf16 %v1159, %v1159
        %v1161 = vld [vmem:[%s9] sm:$0xf]
        %v1162 = vld [vmem:[%s9 + $0x4] sm:$0xf]
        %v1163 = vld [vmem:[%s9 + $0x8] sm:$0xf]
        %v1164 = vld [vmem:[%s9 + $0xc] sm:$0xf]
        %v1165 = vld [vmem:[%s9 + $0x10] sm:$0xf]
        %v1166 = vld [vmem:[%s9 + $0x14] sm:$0xf]
        %v1167 = vld [vmem:[%s9 + $0x18] sm:$0xf]
        %v1168 = vld [vmem:[%s9 + $0x1c] sm:$0xf]
        %v1169 = vld [vmem:[%s10] sm:$0x1]
        %v1171 = vlaneseq
        %v1172 = vshrl.u32 %v1171, 7
        %v1173 = vsub.s32 0, %v1172
        %v1174 = vrot.slane %v1169, %v1173
        %v1184 = vunpack.c.l.b16 %v1161
        %v1185 = vunpack.c.l.b16 %v1162
        %v1186 = vunpack.c.l.b16 %v1163
        %v1187 = vunpack.c.l.b16 %v1164
        %v1188 = vunpack.c.l.b16 %v1165
        %v1189 = vunpack.c.l.b16 %v1166
        %v1190 = vunpack.c.l.b16 %v1167
        %v1191 = vunpack.c.l.b16 %v1168
        %v1192 = vpack.c.b16 %v1185, %v1184
        %v1193 = vpack.c.b16 %v1187, %v1186
        %v1194 = vpack.c.b16 %v1189, %v1188
        %v1195 = vpack.c.b16 %v1191, %v1190
        %vm1200 = vcmask 523264
        %v1202 = vsel %vm1200, %v1160, 0
        %1204 = vmatprep.subr.bf16.mxu0 0
        %1205 = vmatpush1.bf16.msra.mxu0 %v1192
        %1206 = vmatprep.subr.bf16.mxu0 0
        %1207 = vmatpush1.bf16.msra.mxu0 %v1193
        %1208 = vmatprep.subr.bf16.mxu0 0
        %1209 = vmatpush1.bf16.msra.mxu0 %v1194
        %1210 = vmatprep.subr.bf16.mxu0 0
        %1211 = vmatpush1.bf16.msra.mxu0 %v1195
        %1212 = vmatprep.subr.bf16.mxu0 0
        %1213 = vmatpush1.bf16.msra.mxu0 0
        %1214 = vmatprep.subr.bf16.mxu0 0
        %1215 = vmatpush1.bf16.msra.mxu0 0
        %1216 = vmatprep.subr.bf16.mxu0 0
        %1217 = vmatpush1.bf16.msra.mxu0 0
        %1218 = vmatprep.subr.bf16.mxu0 0
        %1219 = vmatpush1.bf16.msra.mxu0 0
        %1220 = vmatprep.subr.bf16.mxu0 0
        %1221 = vmatpush1.bf16.msra.mxu0 0
        %1222 = vmatprep.subr.bf16.mxu0 0
        %1223 = vmatpush1.bf16.msra.mxu0 0
        %1224 = vmatprep.subr.bf16.mxu0 0
        %1225 = vmatpush1.bf16.msra.mxu0 0
        %1226 = vmatprep.subr.bf16.mxu0 0
        %1227 = vmatpush1.bf16.msra.mxu0 0
        %1228 = vmatprep.subr.bf16.mxu0 0
        %1229 = vmatpush1.bf16.msra.mxu0 0
        %1230 = vmatprep.subr.bf16.mxu0 0
        %1231 = vmatpush1.bf16.msra.mxu0 0
        %1232 = vmatprep.subr.bf16.mxu0 0
        %1233 = vmatpush1.bf16.msra.mxu0 0
        %1234 = vmatprep.subr.bf16.mxu0 0
        %1235 = vmatpush1.bf16.msra.mxu0 0
        %1236 = vmatprep.mubr.bf16.mxu0 0
        %1237 = vmatmul.mubr.bf16.gmra.mrb[0].mxu0 %v1202
        %v1238 = vpop.f32.mrb[0].mxu0
        %v1239 = vadd.f32 %v1174, %v1238
        %v1240 = vpop.f32.mrb[0].mxu0
        %v1241 = vpop.f32.mrb[0].mxu0
        %v1242 = vpop.f32.mrb[0].mxu0
        %1243 = vdwg.mxu0
        %v1244 = vadd.f32 %v1239, %v1087
        %v1245 = vld [vmem:[%s11] sm:$0x1]
        %v1246 = vld [vmem:[%s12] sm:$0x1]
        %v1247 = vsel %vm477, %v1244, 0.0
        %1248 = vadd.xlane.f32.xlu0 %v1247
        %v1249 = vpop.xlane.xlu0 %1248
        %v1250 = vmul.f32 %v1249, %v1063
        %v1251 = vsub.f32 %v1244, %v1250
        %v1252 = vmul.f32 %v1251, %v1251
        %v1253 = vsel %vm477, %v1252, 0.0
        %1254 = vadd.xlane.f32.xlu0 %v1253
        %v1255 = vpop.xlane.xlu0 %1254
        %v1256 = vmul.f32 %v1255, %v1063
        %v1257 = vadd.f32 %v1256, 1e-05
        %v1258 = vrsqrt.pop %v1257
        %v1259 = vmul.f32 %v1251, %v1258
        %v1261 = vlaneseq
        %v1262 = vshrl.u32 %v1261, 7
        %v1263 = vsub.s32 0, %v1262
        %v1264 = vrot.slane %v1245, %v1263
        %v1266 = vmul.f32 %v1259, %v1264
        %v1268 = vlaneseq
        %v1269 = vshrl.u32 %v1268, 7
        %v1270 = vsub.s32 0, %v1269
        %v1271 = vrot.slane %v1246, %v1270
        %v1273 = vadd.f32 %v1266, %v1271
        %1274 = vst.msk [vmem:[%s446] sm:$0xff] %vm477, %v1273
        %s1275 = sand.u32 %s314, 1
        %s1276 = scalar_lea.sflag [#allocation4], %s1275
        %s1277 = sand.u32 %s314, 1
        %s1278 = smul.addr %s1277, 8
        %s1279 = scalar_lea.vmem [#allocation5], %s1278
        // Predicated region
        $region77: #{tpu_custom_call.1} parent=71 // pred_check
          %p1280 = pneg %p324
        $region78: #{tpu_custom_call.1} parent=71 // pred_check_branch
          %1282 = sbr.rel (%p1280) target = $region80
        $region79: #{tpu_custom_call.1} parent=71 // pred_region
          %s1284 = ssub.s32 128, 128
          %1285 = vsyncadd %s1276, %s1284
          %s1286 = smul.addr %s28, 128
          %s1287 = scalar_lea.hbm %s13, %s1286
          %s1289 = sshll.u32 %s1279, 4
          %s1290 = int_to_ptr.vmem [resolvable:$true] %s1289
          %1292 = dma.vmem_to_hbm [thread:$0]  %s1290, 128, %s1287, %s1276
        $region80: #{tpu_custom_call.1} parent=71 // pred_fallthru
          _
      $region72: #{tpu_custom_call.1} parent=5 // pred_fallthru
        _
      %p1293 = scmp.le.s32.totalorder 2, %s23
      // Predicated region
      $region81: #{tpu_custom_call.1} parent=5 // pred_check
        %p1294 = pneg %p1293
      $region82: #{tpu_custom_call.1} parent=5 // pred_check_branch
        %1296 = sbr.rel (%p1294) target = $region84
      $region83: #{tpu_custom_call.1} parent=5 // pred_region
        %s1297 = ssub.s32 %s23, 2
        // Predicated region
        $region85: #{tpu_custom_call.1} parent=83 // pred_check
          %p1298 = pneg %p330
        $region86: #{tpu_custom_call.1} parent=83 // pred_check_branch
          %1300 = sbr.rel (%p1298) target = $region88
        $region87: #{tpu_custom_call.1} parent=83 // pred_region
          %s1301 = sand.u32 %s315, 1
          %s1302 = scalar_lea.sflag [#allocation4], %s1301
          %s1303 = sand.u32 %s315, 1
          %s1304 = smul.addr %s1303, 8
          %s1305 = scalar_lea.vmem [#allocation5], %s1304
          %1306 = dma.done %s1302, 128
        $region88: #{tpu_custom_call.1} parent=83 // pred_fallthru
          _
      $region84: #{tpu_custom_call.1} parent=5 // pred_fallthru
        _
    $region6: #{tpu_custom_call.1} parent=1 // loop_footer
      %s27 = sadd.s32 1, %s23
    $region7: #{tpu_custom_call.1} parent=1 // loop_footer_branch
      %22 = sbr.rel target = $region3
    $region8: #{tpu_custom_call.1} parent=1 // loop_exit
      _
    %1307 = vsyncpa [#allocation3], 1
    %s1308 = scalar_lea.sflag [#allocation3], 1
    %1309 = vsyncpa %s1308, 1
    %1310 = vsyncpa [#allocation4], 1
    %s1311 = scalar_lea.sflag [#allocation4], 1
    %1312 = vsyncpa %s1311, 1

</llo_original>
